<compile_context>
chip_gen: v7x
topology: tpu7x:2x2x1
jax: 0.10.0
libtpu: 0.0.40
codegen_flags: <defaults>
</compile_context>

<pallas_src>
import functools

import jax
import jax.numpy as jnp
from jax import lax
from jax.experimental import pallas as pl
from jax.experimental.pallas import tpu as pltpu

NC = 50       # input features
H1 = 1000     # first hidden width
H2 = 100      # second hidden width
DIM = 1       # output dim
BN_EPS = 1e-5

# lane/sublane friendly padded sizes used inside the kernel
NCP = 64      # 50 real features + 1 bias column + zero padding
H1P = 1024
H2P = 128


def _round_up(n, m):
    return ((n + m - 1) // m) * m


def _cdiv(a, b):
    return -(-a // b)


# ------------------------------------------------------------------ Pallas kernel
def _fc_kernel(x_ref, w1_ref, w2_ref, b2_ref, w3_ref, b3_ref, o_ref):
    # x:  (TB, NCP) bf16, column NC holds 1.0 (folds b1 into matmul 1)
    # w1: (NCP, H1P) bf16, row NC holds b1      | w2: (H1P, H2P) bf16
    # b2: (1, H2P) f32 | w3: (H2P, 1) bf16 column | b3: (1, 1) f32 in SMEM
    # o:  (TB, 1) f32 pre-BatchNorm activation
    h = jnp.dot(x_ref[...], w1_ref[...], preferred_element_type=jnp.float32)
    h = jnp.maximum(h, 0.0)                                     # ReLU (bias folded)
    h = jnp.dot(h.astype(jnp.bfloat16), w2_ref[...],
                preferred_element_type=jnp.float32)
    h = jnp.maximum(h + b2_ref[...], 0.0)                       # ReLU
    # Layer 3 as an N=1 MXU matmul instead of a VPU/XLU lane reduction.
    o_ref[...] = jnp.dot(h.astype(jnp.bfloat16), w3_ref[...],
                         preferred_element_type=jnp.float32) + b3_ref[0, 0]


# ------------------------------------------------------------ one-time weight pack
def prepare_params(params):
    """Hoisted out of the hot path: pad weights to lane-friendly shapes, cast the
    matmul operands to bf16, and fold b1 into an extra row of w1."""
    w1, b1, w2, b2, w3, b3, bnw, bnb = params
    w1p = jnp.zeros((NCP, H1P), jnp.bfloat16)
    w1p = w1p.at[:NC, :H1].set(w1.astype(jnp.bfloat16))
    w1p = w1p.at[NC, :H1].set(b1.astype(jnp.bfloat16))          # folded bias row
    w2p = jnp.zeros((H1P, H2P), jnp.bfloat16).at[:H1, :H2].set(w2.astype(jnp.bfloat16))
    b2p = jnp.zeros((1, H2P), jnp.float32).at[0, :H2].set(b2.astype(jnp.float32))
    w3p = jnp.zeros((H2P, 1), jnp.bfloat16).at[:H2, 0].set(
        w3.reshape(-1).astype(jnp.bfloat16))
    b3p = jnp.reshape(b3, (1, 1)).astype(jnp.float32)
    bnwp = jnp.reshape(bnw, (1, DIM)).astype(jnp.float32)
    bnbp = jnp.reshape(bnb, (1, DIM)).astype(jnp.float32)
    return (w1p, w2p, b2p, w3p, b3p, bnwp, bnbp)


# ----------------------------------------------------------------------- forward
@functools.partial(jax.jit, static_argnames=("block_b", "min_steps"))
def discriminator_wgan_forward(x, prepared, *, block_b=2048, min_steps=2):
    """x: (B, NC) f32, prepared = prepare_params(params) -> (B, DIM) f32
    == sigmoid(BatchNorm1d(fc(x)))."""
    B = x.shape[0]
    w1p, w2p, b2p, w3p, b3p, bnw, bnb = prepared

    # Balanced batch tiling: even number of grid steps (>= min_steps) so the batch
    # axis shards across both v7x TensorCores and padded-row waste stays minimal.
    steps = max(min_steps, _cdiv(B, block_b))
    steps += steps % 2
    tb = _round_up(_cdiv(B, steps), 16)     # multiple of 16 (bf16 sublane packing)
    bp = tb * steps

    # Per-call input padding; bias column NC = 1.0 folds b1 into matmul 1.
    xp = jnp.zeros((bp, NCP), jnp.bfloat16)
    xp = xp.at[:B, :NC].set(x.astype(jnp.bfloat16))
    xp = xp.at[:, NC].set(1.0)

    flops = 2 * bp * (NCP * H1P + H1P * H2P + H2P)
    bytes_accessed = (bp * NCP * 2                        # x (bf16)
                      + (NCP * H1P + H1P * H2P + H2P) * 2  # bf16 weights
                      + (H2P + 1) * 4                     # f32 b2 / b3
                      + bp * 4)                           # f32 output

    h3p = pl.pallas_call(
        _fc_kernel,
        out_shape=jax.ShapeDtypeStruct((bp, 1), jnp.float32),
        grid=(steps,),
        in_specs=[
            pl.BlockSpec((tb, NCP), lambda i: (i, 0)),           # x tile (pipelined)
            pl.BlockSpec((NCP, H1P), lambda i: (0, 0)),          # w1 (+b1 row), resident
            pl.BlockSpec((H1P, H2P), lambda i: (0, 0)),          # w2, resident
            pl.BlockSpec((1, H2P), lambda i: (0, 0)),            # b2, resident
            pl.BlockSpec((H2P, 1), lambda i: (0, 0)),            # w3 column, resident
            pl.BlockSpec(memory_space=pltpu.MemorySpace.SMEM),   # b3 scalar
        ],
        out_specs=pl.BlockSpec((tb, 1), lambda i: (i, 0)),
        compiler_params=pltpu.CompilerParams(
            dimension_semantics=("parallel",),
            vmem_limit_bytes=48 * 1024 * 1024,
        ),
        cost_estimate=pl.CostEstimate(
            flops=int(flops), transcendentals=0,
            bytes_accessed=int(bytes_accessed)),
    )(xp, w1p, w2p, b2p, w3p, b3p)

    # BatchNorm1d(1) (training-mode batch stats, biased var) + sigmoid on the tiny
    # (B,1) pre-BN result, in plain XLA so the batch grid axis stays fully parallel.
    # Padded rows are dropped first so the statistics are exact.
    h3 = h3p[:B]
    mean = jnp.mean(h3, axis=0, keepdims=True)
    var = jnp.mean(jnp.square(h3 - mean), axis=0, keepdims=True)
    z = (h3 - mean) * lax.rsqrt(var + BN_EPS)
    return jax.nn.sigmoid(z * bnw + bnb)      # (B, DIM)  == .view(-1, dim)


# ------------------------------------------------------------------- init / ref
def init_params(key):
    """weights_init: Linear/BN weights ~ N(0, 0.0002), biases = 0.0001.
    Linear weights stored as (in, out) so the forward computes h @ W + b."""
    ks = jax.random.split(key, 4)
    std = 0.0002
    w1 = std * jax.random.normal(ks[0], (NC, H1), jnp.float32)
    b1 = jnp.full((H1,), 1e-4, jnp.float32)
    w2 = std * jax.random.normal(ks[1], (H1, H2), jnp.float32)
    b2 = jnp.full((H2,), 1e-4, jnp.float32)
    w3 = std * jax.random.normal(ks[2], (H2, DIM), jnp.float32)
    b3 = jnp.full((DIM,), 1e-4, jnp.float32)
    bnw = std * jax.random.normal(ks[3], (DIM,), jnp.float32)
    bnb = jnp.full((DIM,), 1e-4, jnp.float32)
    return (w1, b1, w2, b2, w3, b3, bnw, bnb)


def reference_forward(x, params):
    """Pure-JAX f32 reference matching the PyTorch module."""
    w1, b1, w2, b2, w3, b3, bnw, bnb = params
    h = jnp.maximum(x @ w1 + b1, 0.0)
    h = jnp.maximum(h @ w2 + b2, 0.0)
    h = h @ w3 + b3
    mean = jnp.mean(h, axis=0, keepdims=True)
    var = jnp.mean((h - mean) ** 2, axis=0, keepdims=True)
    z = (h - mean) / jnp.sqrt(var + BN_EPS) * bnw + bnb
    return jax.nn.sigmoid(z).reshape(-1, DIM)


if __name__ == "__main__":
    key = jax.random.PRNGKey(0)
    k_param, k_x = jax.random.split(key)

    B = 100  # small batch; deliberately not a multiple of the tile to exercise padding
    params = init_params(k_param)
    prepared = prepare_params(params)           # one-time weight pack (hoisted)
    x = jax.random.normal(k_x, (B, NC), jnp.float32)

    ref = reference_forward(x, params)

    # Production-style config (2 balanced tiles) and a small-tile config (4 tiles,
    # exercises the pipeline); both must match the f32 reference.
    for blk in (2048, 32):
        out = discriminator_wgan_forward(x, prepared, block_b=blk)
        out = jax.block_until_ready(out)
        assert out.shape == (B, DIM)
        assert bool(jnp.all(jnp.isfinite(out)))
        err = float(jnp.max(jnp.abs(out - ref)))
        spread = float(jnp.max(ref) - jnp.min(ref))
        # bf16 MXU matmuls with f32 accumulation vs f32 reference: tight absolute
        # error and small relative to the output's dynamic range.
        assert err < 1e-4, (blk, err)
        assert err <= 0.1 * spread + 1e-6, (blk, err, spread)

    print("KERNEL_OK")
</pallas_src>

<mosaic_0001>
module attributes {stable_mosaic.version = 11 : i64} {
  func.func @_fc_kernel(%arg0: i32, %arg1: memref<64x64xbf16, #tpu.memory_space<vmem>>, %arg2: memref<64x1024xbf16, #tpu.memory_space<vmem>>, %arg3: memref<1024x128xbf16, #tpu.memory_space<vmem>>, %arg4: memref<1x128xf32, #tpu.memory_space<vmem>>, %arg5: memref<128x1xbf16, #tpu.memory_space<vmem>>, %arg6: memref<1x1xf32, #tpu.memory_space<smem>>, %arg7: memref<64x1xf32, #tpu.memory_space<vmem>>) attributes {dimension_semantics = [#tpu.dimension_semantics<parallel>], iteration_bounds = array<i64: 2>, scalar_prefetch = 0 : i64, scratch_operands = 0 : i64, tpu.core_type = #tpu.core_type<tc>, window_params = [{transform_indices = @transform_0, window_bounds = array<i64: 64, 64>}, {pipeline_mode = #tpu.pipeline_mode<synchronous>, transform_indices = @transform_1, window_bounds = array<i64: 64, 1024>}, {pipeline_mode = #tpu.pipeline_mode<synchronous>, transform_indices = @transform_2, window_bounds = array<i64: 1024, 128>}, {pipeline_mode = #tpu.pipeline_mode<synchronous>, transform_indices = @transform_3, window_bounds = array<i64: 1, 128>}, {pipeline_mode = #tpu.pipeline_mode<synchronous>, transform_indices = @transform_4, window_bounds = array<i64: 128, 1>}, {transform_indices = @transform_5, window_bounds = array<i64: 1, 1>}, {transform_indices = @transform_6, window_bounds = array<i64: 64, 1>}]} {
    %c0 = arith.constant 0 : index
    %c0_0 = arith.constant 0 : index
    %0 = vector.load %arg1[%c0, %c0_0] : memref<64x64xbf16, #tpu.memory_space<vmem>>, vector<64x64xbf16>
    %c0_1 = arith.constant 0 : index
    %c0_2 = arith.constant 0 : index
    %1 = vector.load %arg2[%c0_1, %c0_2] : memref<64x1024xbf16, #tpu.memory_space<vmem>>, vector<64x1024xbf16>
    %cst = arith.constant dense<0.000000e+00> : vector<64x1024xf32>
    %2 = tpu.matmul %0, %1, %cst {dimension_numbers = #tpu.dot_dimension_numbers<[1], [0], [0], [1], [0, 0, 1, 1], [], []>} : vector<64x64xbf16>, vector<64x1024xbf16>, vector<64x1024xf32> -> vector<64x1024xf32>
    %cst_3 = arith.constant 0.000000e+00 : f32
    %3 = vector.broadcast %cst_3 : f32 to vector<64x1024xf32>
    %4 = arith.maximumf %2, %3 : vector<64x1024xf32>
    %5 = arith.truncf %4 : vector<64x1024xf32> to vector<64x1024xbf16>
    %c0_4 = arith.constant 0 : index
    %c0_5 = arith.constant 0 : index
    %6 = vector.load %arg3[%c0_4, %c0_5] : memref<1024x128xbf16, #tpu.memory_space<vmem>>, vector<1024x128xbf16>
    %cst_6 = arith.constant dense<0.000000e+00> : vector<64x128xf32>
    %7 = tpu.matmul %5, %6, %cst_6 {dimension_numbers = #tpu.dot_dimension_numbers<[1], [0], [0], [1], [0, 0, 1, 1], [], []>} : vector<64x1024xbf16>, vector<1024x128xbf16>, vector<64x128xf32> -> vector<64x128xf32>
    %c0_7 = arith.constant 0 : index
    %c0_8 = arith.constant 0 : index
    %8 = vector.load %arg4[%c0_7, %c0_8] : memref<1x128xf32, #tpu.memory_space<vmem>>, vector<1x128xf32>
    %9 = vector.broadcast %8 : vector<1x128xf32> to vector<64x128xf32>
    %10 = arith.addf %7, %9 : vector<64x128xf32>
    %cst_9 = arith.constant 0.000000e+00 : f32
    %11 = vector.broadcast %cst_9 : f32 to vector<64x128xf32>
    %12 = arith.maximumf %10, %11 : vector<64x128xf32>
    %13 = arith.truncf %12 : vector<64x128xf32> to vector<64x128xbf16>
    %c0_10 = arith.constant 0 : index
    %c0_11 = arith.constant 0 : index
    %14 = vector.load %arg5[%c0_10, %c0_11] : memref<128x1xbf16, #tpu.memory_space<vmem>>, vector<128x1xbf16>
    %cst_12 = arith.constant dense<0.000000e+00> : vector<64x1xf32>
    %15 = tpu.matmul %13, %14, %cst_12 {dimension_numbers = #tpu.dot_dimension_numbers<[1], [0], [0], [1], [0, 0, 1, 1], [], []>} : vector<64x128xbf16>, vector<128x1xbf16>, vector<64x1xf32> -> vector<64x1xf32>
    %c0_13 = arith.constant 0 : index
    %c0_14 = arith.constant 0 : index
    %16 = memref.load %arg6[%c0_13, %c0_14] : memref<1x1xf32, #tpu.memory_space<smem>>
    %17 = vector.broadcast %16 : f32 to vector<64x1xf32>
    %18 = arith.addf %15, %17 : vector<64x1xf32>
    %c0_15 = arith.constant 0 : index
    %c0_16 = arith.constant 0 : index
    %19 = vector.load %arg7[%c0_15, %c0_16] : memref<64x1xf32, #tpu.memory_space<vmem>>, vector<64x1xf32>
    tpu.vector_store %arg7[%c0_15, %c0_16], %18 {strides = array<i32>} : memref<64x1xf32, #tpu.memory_space<vmem>>, vector<64x1xf32>,
    return
  }
  func.func @transform_0(%arg0: i32) -> (i32, i32) {
    %c0_i32 = arith.constant 0 : i32
    %c0_i32_0 = arith.constant 0 : i32
    return %arg0, %c0_i32 : i32, i32
  }
  func.func @transform_1(%arg0: i32) -> (i32, i32) {
    %c0_i32 = arith.constant 0 : i32
    %c0_i32_0 = arith.constant 0 : i32
    %c0_i32_1 = arith.constant 0 : i32
    return %c0_i32, %c0_i32_0 : i32, i32
  }
  func.func @transform_2(%arg0: i32) -> (i32, i32) {
    %c0_i32 = arith.constant 0 : i32
    %c0_i32_0 = arith.constant 0 : i32
    %c0_i32_1 = arith.constant 0 : i32
    return %c0_i32, %c0_i32_0 : i32, i32
  }
  func.func @transform_3(%arg0: i32) -> (i32, i32) {
    %c0_i32 = arith.constant 0 : i32
    %c0_i32_0 = arith.constant 0 : i32
    %c0_i32_1 = arith.constant 0 : i32
    return %c0_i32, %c0_i32_0 : i32, i32
  }
  func.func @transform_4(%arg0: i32) -> (i32, i32) {
    %c0_i32 = arith.constant 0 : i32
    %c0_i32_0 = arith.constant 0 : i32
    %c0_i32_1 = arith.constant 0 : i32
    return %c0_i32, %c0_i32_0 : i32, i32
  }
  func.func @transform_5(%arg0: i32) -> (i32, i32) {
    %c0_i32 = arith.constant 0 : i32
    %c0_i32_0 = arith.constant 0 : i32
    %c0_i32_1 = arith.constant 0 : i32
    return %c0_i32, %c0_i32_0 : i32, i32
  }
  func.func @transform_6(%arg0: i32) -> (i32, i32) {
    %c0_i32 = arith.constant 0 : i32
    %c0_i32_0 = arith.constant 0 : i32
    return %arg0, %c0_i32 : i32, i32
  }
}

</mosaic_0001>

<llo_original>
// kernel: discriminator_wgan_forward.1
$region0: #{discriminator_wgan_forward.1}
  #allocation0 [shape = 'u32[]', space=smem, size = 0x4, offset = 0x4, fixed_abs, tag = 'smem constant byte address 0x4 - core index']
  #allocation1 [shape = 'u32[144,128]{1,0:T(1,128)}', space=vmem, size = 0x12000, scoped, tag = 'internal scratch']
  #allocation2 [shape = 'f32[1,1]{1,0:T(1,128)S(6)}', space=smem, size = 0x200, scoped, tag = 'scoped memory for discriminator_wgan_forward.1']
  %s0 = inlined_call_operand.vmem [shape: bf16[128,64], index: 0, kind: input, shape index: {}]
  %s1 = inlined_call_operand.hbm [shape: bf16[64,1024], index: 1, kind: input, shape index: {}]
  %s2 = inlined_call_operand.vmem [shape: bf16[1024,128], index: 2, kind: input, shape index: {}]
  %s3 = inlined_call_operand.vmem [shape: f32[1,128], index: 3, kind: input, shape index: {}]
  %s4 = inlined_call_operand.vmem [shape: bf16[128,1], index: 4, kind: input, shape index: {}]
  %s5 = inlined_call_operand.<no memory space> [shape: f32[1,1], index: 5, kind: input, shape index: {}]
  %s6 = inlined_call_operand.vmem [shape: f32[128,1], index: 6, kind: output, shape index: {}]
  %s7 = sld [smem:[#allocation0]]
  $region61: #{discriminator_wgan_forward.1} parent=0
    _
  %s9 = ssub.s32 1, %s7
  %s10 = scalar_select 0, %s9, %s7
  %11 = sst [smem:[#allocation2]] %s5
  $region1: #{discriminator_wgan_forward.1} parent=0
    #allocation3 [shape = 'u8[131072]{0}', space=vmem, size = 0x20000, scoped, tag = 'input window, operand 1, single buffered']
    #allocation4 [shape = 's32[2]{0}', space=sflag, size = 0x8, scoped, tag = 'scoped memory for discriminator_wgan_forward.1']
    %12 = vsyncpa [#allocation4], 0
    loop: start=0, step=1, limit=4
    $region2: #{discriminator_wgan_forward.1} parent=1 // loop_pre_header
      _
    $region3: #{discriminator_wgan_forward.1} parent=1 // loop_header
      %s14 = sphi 0, %s18
      %p15 = scmp.ge.s32.totalorder %s14, 4
      %s24 = sphi 0, %s26
      %s27 = sphi 0, %s24
      %s28 = sphi 0, %s27
      %s44 = sphi 0, %s28
      %s48 = sphi 0, %s48
      %s50 = sphi 0, %s48
      %s51 = sphi 0, %s50
      %s65 = sphi 0, %s51
      %s69 = sphi 0, %s69
      %s71 = sphi 0, %s69
      %s72 = sphi 0, %s71
      %s86 = sphi 0, %s72
      %s90 = sphi 0, %s90
      %s92 = sphi 0, %s90
      %s93 = sphi 0, %s92
      %s107 = sphi 0, %s93
      %s111 = sphi 0, %s111
      %s113 = sphi 0, %s111
      %s114 = sphi 0, %s113
      %s128 = sphi 0, %s114
      %s132 = sphi 0, %s132
      %s134 = sphi 0, %s132
      %s135 = sphi 0, %s134
      %s149 = sphi 0, %s135
      %s155 = sphi 0, %s157
      %s158 = sphi 0, %s155
      %s159 = sphi 0, %s158
      %s175 = sphi 0, %s159
    $region4: #{discriminator_wgan_forward.1} parent=1 // loop_header_branch
      %17 = sbr.rel (%p15) target = $region8
    $region5: #{discriminator_wgan_forward.1} parent=1 // loop_body
      %s19 = ssub.s32 %s14, 1
      %s20 = ssub.s32 %s14, 2
      %s21 = sadd.s32 %s14, 1
      %s22 = ssub.s32 %s14, %s21
      %p23 = scmp.eq.s32.totalorder %s22, 0
      %s25 = sadd.s32 %s24, 1
      %s26 = scalar_select %p23, %s24, %s25
      %p29 = pneg %p23
      %p30 = scmp.eq.s32.totalorder %s14, 1
      %p31 = por %p29, %p30
      %p32 = scmp.ne.s32.totalorder %s24, %s27
      %p33 = scmp.eq.s32.totalorder %s14, 0
      %p34 = por %p32, %p33
      %p35 = scmp.ne.s32.totalorder %s24, %s27
      %p36 = scmp.eq.s32.totalorder %s19, 1
      %p37 = por %p35, %p36
      %p38 = scmp.ne.s32.totalorder %s27, %s28
      %p39 = scmp.eq.s32.totalorder %s19, 0
      %p40 = por %p38, %p39
      %p41 = scmp.ne.s32.totalorder %s27, %s28
      %p42 = scmp.eq.s32.totalorder %s20, 1
      %p43 = por %p41, %p42
      %p45 = scmp.ne.s32.totalorder %s28, %s44
      %p46 = scmp.eq.s32.totalorder %s20, 0
      %p47 = por %p45, %p46
      %s49 = sadd.s32 %s48, 1
      %p52 = scmp.eq.s32.totalorder %s14, 1
      %p53 = scmp.ne.s32.totalorder %s48, %s50
      %p54 = scmp.eq.s32.totalorder %s14, 0
      %p55 = por %p53, %p54
      %p56 = scmp.ne.s32.totalorder %s48, %s50
      %p57 = scmp.eq.s32.totalorder %s19, 1
      %p58 = por %p56, %p57
      %p59 = scmp.ne.s32.totalorder %s50, %s51
      %p60 = scmp.eq.s32.totalorder %s19, 0
      %p61 = por %p59, %p60
      %p62 = scmp.ne.s32.totalorder %s50, %s51
      %p63 = scmp.eq.s32.totalorder %s20, 1
      %p64 = por %p62, %p63
      %p66 = scmp.ne.s32.totalorder %s51, %s65
      %p67 = scmp.eq.s32.totalorder %s20, 0
      %p68 = por %p66, %p67
      %s70 = sadd.s32 %s69, 1
      %p73 = scmp.eq.s32.totalorder %s14, 1
      %p74 = scmp.ne.s32.totalorder %s69, %s71
      %p75 = scmp.eq.s32.totalorder %s14, 0
      %p76 = por %p74, %p75
      %p77 = scmp.ne.s32.totalorder %s69, %s71
      %p78 = scmp.eq.s32.totalorder %s19, 1
      %p79 = por %p77, %p78
      %p80 = scmp.ne.s32.totalorder %s71, %s72
      %p81 = scmp.eq.s32.totalorder %s19, 0
      %p82 = por %p80, %p81
      %p83 = scmp.ne.s32.totalorder %s71, %s72
      %p84 = scmp.eq.s32.totalorder %s20, 1
      %p85 = por %p83, %p84
      %p87 = scmp.ne.s32.totalorder %s72, %s86
      %p88 = scmp.eq.s32.totalorder %s20, 0
      %p89 = por %p87, %p88
      %s91 = sadd.s32 %s90, 1
      %p94 = scmp.eq.s32.totalorder %s14, 1
      %p95 = scmp.ne.s32.totalorder %s90, %s92
      %p96 = scmp.eq.s32.totalorder %s14, 0
      %p97 = por %p95, %p96
      %p98 = scmp.ne.s32.totalorder %s90, %s92
      %p99 = scmp.eq.s32.totalorder %s19, 1
      %p100 = por %p98, %p99
      %p101 = scmp.ne.s32.totalorder %s92, %s93
      %p102 = scmp.eq.s32.totalorder %s19, 0
      %p103 = por %p101, %p102
      %p104 = scmp.ne.s32.totalorder %s92, %s93
      %p105 = scmp.eq.s32.totalorder %s20, 1
      %p106 = por %p104, %p105
      %p108 = scmp.ne.s32.totalorder %s93, %s107
      %p109 = scmp.eq.s32.totalorder %s20, 0
      %p110 = por %p108, %p109
      %s112 = sadd.s32 %s111, 1
      %p115 = scmp.eq.s32.totalorder %s14, 1
      %p116 = scmp.ne.s32.totalorder %s111, %s113
      %p117 = scmp.eq.s32.totalorder %s14, 0
      %p118 = por %p116, %p117
      %p119 = scmp.ne.s32.totalorder %s111, %s113
      %p120 = scmp.eq.s32.totalorder %s19, 1
      %p121 = por %p119, %p120
      %p122 = scmp.ne.s32.totalorder %s113, %s114
      %p123 = scmp.eq.s32.totalorder %s19, 0
      %p124 = por %p122, %p123
      %p125 = scmp.ne.s32.totalorder %s113, %s114
      %p126 = scmp.eq.s32.totalorder %s20, 1
      %p127 = por %p125, %p126
      %p129 = scmp.ne.s32.totalorder %s114, %s128
      %p130 = scmp.eq.s32.totalorder %s20, 0
      %p131 = por %p129, %p130
      %s133 = sadd.s32 %s132, 1
      %p136 = scmp.eq.s32.totalorder %s14, 1
      %p137 = scmp.ne.s32.totalorder %s132, %s134
      %p138 = scmp.eq.s32.totalorder %s14, 0
      %p139 = por %p137, %p138
      %p140 = scmp.ne.s32.totalorder %s132, %s134
      %p141 = scmp.eq.s32.totalorder %s19, 1
      %p142 = por %p140, %p141
      %p143 = scmp.ne.s32.totalorder %s134, %s135
      %p144 = scmp.eq.s32.totalorder %s19, 0
      %p145 = por %p143, %p144
      %p146 = scmp.ne.s32.totalorder %s134, %s135
      %p147 = scmp.eq.s32.totalorder %s20, 1
      %p148 = por %p146, %p147
      %p150 = scmp.ne.s32.totalorder %s135, %s149
      %p151 = scmp.eq.s32.totalorder %s20, 0
      %p152 = por %p150, %p151
      %s153 = ssub.s32 %s14, %s21
      %p154 = scmp.eq.s32.totalorder %s153, 0
      %s156 = sadd.s32 %s155, 1
      %s157 = scalar_select %p154, %s155, %s156
      %p160 = pneg %p154
      %p161 = scmp.eq.s32.totalorder %s14, 1
      %p162 = por %p160, %p161
      %p163 = scmp.ne.s32.totalorder %s155, %s158
      %p164 = scmp.eq.s32.totalorder %s14, 0
      %p165 = por %p163, %p164
      %p166 = scmp.ne.s32.totalorder %s155, %s158
      %p167 = scmp.eq.s32.totalorder %s19, 1
      %p168 = por %p166, %p167
      %p169 = scmp.ne.s32.totalorder %s158, %s159
      %p170 = scmp.eq.s32.totalorder %s19, 0
      %p171 = por %p169, %p170
      %p172 = scmp.ne.s32.totalorder %s158, %s159
      %p173 = scmp.eq.s32.totalorder %s20, 1
      %p174 = por %p172, %p173
      %p176 = scmp.ne.s32.totalorder %s159, %s175
      %p177 = scmp.eq.s32.totalorder %s20, 0
      %p178 = por %p176, %p177
      %p179 = scmp.le.s32.totalorder 1, %s14
      %p180 = scmp.lt.s32.totalorder %s14, 3
      %p181 = pnand %p179, %p180
      %p182 = pneg %p181
      // Predicated region
      $region9: #{discriminator_wgan_forward.1} parent=5 // pred_check
        _
      $region10: #{discriminator_wgan_forward.1} parent=5 // pred_check_branch
        %184 = sbr.rel (%p181) target = $region12
      $region11: #{discriminator_wgan_forward.1} parent=5 // pred_region
        %s185 = ssub.s32 %s14, 1
        // Predicated region
        $region13: #{discriminator_wgan_forward.1} parent=11 // pred_check
          %p186 = pneg %p61
        $region14: #{discriminator_wgan_forward.1} parent=11 // pred_check_branch
          %188 = sbr.rel (%p186) target = $region16
        $region15: #{discriminator_wgan_forward.1} parent=11 // pred_region
          %s190 = ssub.s32 4096, 4096
          %191 = vsyncadd [#allocation4], %s190
          %s192 = sshll.u32 [#allocation3], 4
          %s193 = int_to_ptr.vmem [resolvable:$true] %s192
          %198 = dma.hbm_to_vmem [thread:$0]  %s1, 4096, %s193, [#allocation4], 512, 512, 32
        $region16: #{discriminator_wgan_forward.1} parent=11 // pred_fallthru
          _
        // Predicated region
        $region17: #{discriminator_wgan_forward.1} parent=11 // pred_check
          %p199 = pneg %p82
        $region18: #{discriminator_wgan_forward.1} parent=11 // pred_check_branch
          %201 = sbr.rel (%p199) target = $region20
        $region19: #{discriminator_wgan_forward.1} parent=11 // pred_region
          _
        $region20: #{discriminator_wgan_forward.1} parent=11 // pred_fallthru
          _
        // Predicated region
        $region21: #{discriminator_wgan_forward.1} parent=11 // pred_check
          %p202 = pneg %p103
        $region22: #{discriminator_wgan_forward.1} parent=11 // pred_check_branch
          %204 = sbr.rel (%p202) target = $region24
        $region23: #{discriminator_wgan_forward.1} parent=11 // pred_region
          _
        $region24: #{discriminator_wgan_forward.1} parent=11 // pred_fallthru
          _
        // Predicated region
        $region25: #{discriminator_wgan_forward.1} parent=11 // pred_check
          %p205 = pneg %p124
        $region26: #{discriminator_wgan_forward.1} parent=11 // pred_check_branch
          %207 = sbr.rel (%p205) target = $region28
        $region27: #{discriminator_wgan_forward.1} parent=11 // pred_region
          _
        $region28: #{discriminator_wgan_forward.1} parent=11 // pred_fallthru
          _
        // Predicated region
        $region29: #{discriminator_wgan_forward.1} parent=11 // pred_check
          %p208 = pneg %p145
        $region30: #{discriminator_wgan_forward.1} parent=11 // pred_check_branch
          %210 = sbr.rel (%p208) target = $region32
        $region31: #{discriminator_wgan_forward.1} parent=11 // pred_region
          _
        $region32: #{discriminator_wgan_forward.1} parent=11 // pred_fallthru
          _
      $region12: #{discriminator_wgan_forward.1} parent=5 // pred_fallthru
        _
      %p211 = scmp.lt.s32.totalorder %s14, 2
      // Predicated region
      $region33: #{discriminator_wgan_forward.1} parent=5 // pred_check
        %p212 = pneg %p211
      $region34: #{discriminator_wgan_forward.1} parent=5 // pred_check_branch
        %214 = sbr.rel (%p212) target = $region36
      $region35: #{discriminator_wgan_forward.1} parent=5 // pred_region
        // Predicated region
        $region37: #{discriminator_wgan_forward.1} parent=35 // pred_check
          %p215 = pneg %p34
        $region38: #{discriminator_wgan_forward.1} parent=35 // pred_check_branch
          %217 = sbr.rel (%p215) target = $region40
        $region39: #{discriminator_wgan_forward.1} parent=35 // pred_region
          %s218 = smul.u32 8, %s14
          %p219 = scmp.lt.s32.totalorder %s218, 15
          %s220 = scalar_select %p219, %s218, 15
          %s221 = smul.addr %s220, 4
          %s222 = scalar_lea.vmem %s0, %s221
          %s223 = smul.u32 8, %s14
        $region40: #{discriminator_wgan_forward.1} parent=35 // pred_fallthru
          _
      $region36: #{discriminator_wgan_forward.1} parent=5 // pred_fallthru
        _
      %p224 = scmp.le.s32.totalorder 1, %s14
      %p225 = scmp.lt.s32.totalorder %s14, 3
      %p226 = pnand %p224, %p225
      %p227 = pneg %p226
      // Predicated region
      $region41: #{discriminator_wgan_forward.1} parent=5 // pred_check
        _
      $region42: #{discriminator_wgan_forward.1} parent=5 // pred_check_branch
        %229 = sbr.rel (%p226) target = $region44
      $region43: #{discriminator_wgan_forward.1} parent=5 // pred_region
        %s230 = ssub.s32 %s14, 1
        // Predicated region
        $region45: #{discriminator_wgan_forward.1} parent=43 // pred_check
          %p231 = pneg %p61
        $region46: #{discriminator_wgan_forward.1} parent=43 // pred_check_branch
          %233 = sbr.rel (%p231) target = $region48
        $region47: #{discriminator_wgan_forward.1} parent=43 // pred_region
          %234 = dma.done [#allocation4], 4096
        $region48: #{discriminator_wgan_forward.1} parent=43 // pred_fallthru
          _
        %s235 = smul.u32 8, %s19
        %p236 = scmp.lt.s32.totalorder %s235, 15
        %s237 = scalar_select %p236, %s235, 15
        %s238 = smul.addr %s237, 4
        %s239 = scalar_lea.vmem %s0, %s238
        %p240 = pneg %p40
        %p241 = pneg %p37
        %p242 = pneg %p61
        %p243 = pneg %p58
        %p244 = pneg %p82
        %p245 = pneg %p79
        %p246 = pneg %p103
        %p247 = pneg %p100
        %p248 = pneg %p124
        %p249 = pneg %p121
        %p250 = pneg %p145
        %p251 = pneg %p142
        %p252 = pneg %p171
        %p253 = pneg %p168
        %s254 = smul.u32 8, %s19
        %p255 = scmp.lt.s32.totalorder %s254, 15
        %s256 = scalar_select %p255, %s254, 15
        %s257 = smul.addr %s256, 8
        %s258 = scalar_lea.vmem %s6, %s257
        %s259 = smul.u32 8, %s19
        %p260 = scmp.lt.s32.totalorder %s259, 15
        %s261 = scalar_select %p260, %s259, 15
        %s262 = smul.addr %s261, 4
        %s263 = scalar_lea.vmem %s0, %s262
        %s264 = smul.u32 8, %s19
        %s265 = smul.u32 8, %s19
        %p266 = scmp.lt.s32.totalorder %s265, 15
        %s267 = scalar_select %p266, %s265, 15
        %s268 = smul.addr %s267, 8
        %s269 = scalar_lea.vmem %s6, %s268
        %s270 = smul.u32 8, %s19
        %v272 = vld [vmem:[%s263] sm:$0xf]
        %v273 = vld [vmem:[%s263 + $0x4] sm:$0xf]
        %v274 = vld [vmem:[%s263 + $0x8] sm:$0xf]
        %v275 = vld [vmem:[%s263 + $0xc] sm:$0xf]
        %v276 = vld [vmem:[%s263 + $0x10] sm:$0xf]
        %v277 = vld [vmem:[%s263 + $0x14] sm:$0xf]
        %v278 = vld [vmem:[%s263 + $0x18] sm:$0xf]
        %v279 = vld [vmem:[%s263 + $0x1c] sm:$0xf]
        %v280 = vld [vmem:[#allocation3] sm:$0xff]
        %v281 = vld [vmem:[#allocation3 + $0x8] sm:$0xff]
        %v282 = vld [vmem:[#allocation3 + $0x10] sm:$0xff]
        %v283 = vld [vmem:[#allocation3 + $0x18] sm:$0xff]
        %v284 = vld [vmem:[#allocation3 + $0x20] sm:$0xff]
        %v285 = vld [vmem:[#allocation3 + $0x28] sm:$0xff]
        %v286 = vld [vmem:[#allocation3 + $0x30] sm:$0xff]
        %v287 = vld [vmem:[#allocation3 + $0x38] sm:$0xff]
        %v288 = vld [vmem:[#allocation3 + $0x40] sm:$0xff]
        %v289 = vld [vmem:[#allocation3 + $0x48] sm:$0xff]
        %v290 = vld [vmem:[#allocation3 + $0x50] sm:$0xff]
        %v291 = vld [vmem:[#allocation3 + $0x58] sm:$0xff]
        %v292 = vld [vmem:[#allocation3 + $0x60] sm:$0xff]
        %v293 = vld [vmem:[#allocation3 + $0x68] sm:$0xff]
        %v294 = vld [vmem:[#allocation3 + $0x70] sm:$0xff]
        %v295 = vld [vmem:[#allocation3 + $0x78] sm:$0xff]
        %v296 = vld [vmem:[#allocation3 + $0x80] sm:$0xff]
        %v297 = vld [vmem:[#allocation3 + $0x88] sm:$0xff]
        %v298 = vld [vmem:[#allocation3 + $0x90] sm:$0xff]
        %v299 = vld [vmem:[#allocation3 + $0x98] sm:$0xff]
        %v300 = vld [vmem:[#allocation3 + $0xa0] sm:$0xff]
        %v301 = vld [vmem:[#allocation3 + $0xa8] sm:$0xff]
        %v302 = vld [vmem:[#allocation3 + $0xb0] sm:$0xff]
        %v303 = vld [vmem:[#allocation3 + $0xb8] sm:$0xff]
        %v304 = vld [vmem:[#allocation3 + $0xc0] sm:$0xff]
        %v305 = vld [vmem:[#allocation3 + $0xc8] sm:$0xff]
        %v306 = vld [vmem:[#allocation3 + $0xd0] sm:$0xff]
        %v307 = vld [vmem:[#allocation3 + $0xd8] sm:$0xff]
        %v308 = vld [vmem:[#allocation3 + $0xe0] sm:$0xff]
        %v309 = vld [vmem:[#allocation3 + $0xe8] sm:$0xff]
        %v310 = vld [vmem:[#allocation3 + $0xf0] sm:$0xff]
        %v311 = vld [vmem:[#allocation3 + $0xf8] sm:$0xff]
        %v320 = vunpack.c.l.b16 %v272
        %v321 = vunpack.c.l.b16 %v273
        %v322 = vunpack.c.l.b16 %v274
        %v323 = vunpack.c.l.b16 %v275
        %v324 = vunpack.c.l.b16 %v276
        %v325 = vunpack.c.l.b16 %v277
        %v326 = vunpack.c.l.b16 %v278
        %v327 = vunpack.c.l.b16 %v279
        %v328 = vpack.c.b16 %v321, %v320
        %v329 = vpack.c.b16 %v323, %v322
        %v330 = vpack.c.b16 %v325, %v324
        %v331 = vpack.c.b16 %v327, %v326
        %v364 = vunpack.c.l.b16 %v280
        %v365 = vunpack.c.h.b16 %v280
        %v366 = vunpack.c.l.b16 %v281
        %v367 = vunpack.c.h.b16 %v281
        %v368 = vunpack.c.l.b16 %v282
        %v369 = vunpack.c.h.b16 %v282
        %v370 = vunpack.c.l.b16 %v283
        %v371 = vunpack.c.h.b16 %v283
        %v372 = vunpack.c.l.b16 %v284
        %v373 = vunpack.c.h.b16 %v284
        %v374 = vunpack.c.l.b16 %v285
        %v375 = vunpack.c.h.b16 %v285
        %v376 = vunpack.c.l.b16 %v286
        %v377 = vunpack.c.h.b16 %v286
        %v378 = vunpack.c.l.b16 %v287
        %v379 = vunpack.c.h.b16 %v287
        %v380 = vunpack.c.l.b16 %v288
        %v381 = vunpack.c.h.b16 %v288
        %v382 = vunpack.c.l.b16 %v289
        %v383 = vunpack.c.h.b16 %v289
        %v384 = vunpack.c.l.b16 %v290
        %v385 = vunpack.c.h.b16 %v290
        %v386 = vunpack.c.l.b16 %v291
        %v387 = vunpack.c.h.b16 %v291
        %v388 = vunpack.c.l.b16 %v292
        %v389 = vunpack.c.h.b16 %v292
        %v390 = vunpack.c.l.b16 %v293
        %v391 = vunpack.c.h.b16 %v293
        %v392 = vunpack.c.l.b16 %v294
        %v393 = vunpack.c.h.b16 %v294
        %v394 = vunpack.c.l.b16 %v295
        %v395 = vunpack.c.h.b16 %v295
        %v396 = vunpack.c.l.b16 %v296
        %v397 = vunpack.c.h.b16 %v296
        %v398 = vunpack.c.l.b16 %v297
        %v399 = vunpack.c.h.b16 %v297
        %v400 = vunpack.c.l.b16 %v298
        %v401 = vunpack.c.h.b16 %v298
        %v402 = vunpack.c.l.b16 %v299
        %v403 = vunpack.c.h.b16 %v299
        %v404 = vunpack.c.l.b16 %v300
        %v405 = vunpack.c.h.b16 %v300
        %v406 = vunpack.c.l.b16 %v301
        %v407 = vunpack.c.h.b16 %v301
        %v408 = vunpack.c.l.b16 %v302
        %v409 = vunpack.c.h.b16 %v302
        %v410 = vunpack.c.l.b16 %v303
        %v411 = vunpack.c.h.b16 %v303
        %v412 = vunpack.c.l.b16 %v304
        %v413 = vunpack.c.h.b16 %v304
        %v414 = vunpack.c.l.b16 %v305
        %v415 = vunpack.c.h.b16 %v305
        %v416 = vunpack.c.l.b16 %v306
        %v417 = vunpack.c.h.b16 %v306
        %v418 = vunpack.c.l.b16 %v307
        %v419 = vunpack.c.h.b16 %v307
        %v420 = vunpack.c.l.b16 %v308
        %v421 = vunpack.c.h.b16 %v308
        %v422 = vunpack.c.l.b16 %v309
        %v423 = vunpack.c.h.b16 %v309
        %v424 = vunpack.c.l.b16 %v310
        %v425 = vunpack.c.h.b16 %v310
        %v426 = vunpack.c.l.b16 %v311
        %v427 = vunpack.c.h.b16 %v311
        %v428 = vpack.c.b16 %v372, %v364
        %v429 = vpack.c.b16 %v373, %v365
        %v430 = vpack.c.b16 %v374, %v366
        %v431 = vpack.c.b16 %v375, %v367
        %v432 = vpack.c.b16 %v376, %v368
        %v433 = vpack.c.b16 %v377, %v369
        %v434 = vpack.c.b16 %v378, %v370
        %v435 = vpack.c.b16 %v379, %v371
        %v436 = vpack.c.b16 %v388, %v380
        %v437 = vpack.c.b16 %v389, %v381
        %v438 = vpack.c.b16 %v390, %v382
        %v439 = vpack.c.b16 %v391, %v383
        %v440 = vpack.c.b16 %v392, %v384
        %v441 = vpack.c.b16 %v393, %v385
        %v442 = vpack.c.b16 %v394, %v386
        %v443 = vpack.c.b16 %v395, %v387
        %v444 = vpack.c.b16 %v404, %v396
        %v445 = vpack.c.b16 %v405, %v397
        %v446 = vpack.c.b16 %v406, %v398
        %v447 = vpack.c.b16 %v407, %v399
        %v448 = vpack.c.b16 %v408, %v400
        %v449 = vpack.c.b16 %v409, %v401
        %v450 = vpack.c.b16 %v410, %v402
        %v451 = vpack.c.b16 %v411, %v403
        %v452 = vpack.c.b16 %v420, %v412
        %v453 = vpack.c.b16 %v421, %v413
        %v454 = vpack.c.b16 %v422, %v414
        %v455 = vpack.c.b16 %v423, %v415
        %v456 = vpack.c.b16 %v424, %v416
        %v457 = vpack.c.b16 %v425, %v417
        %v458 = vpack.c.b16 %v426, %v418
        %v459 = vpack.c.b16 %v427, %v419
        %vm492 = vcmask 523264
        %v494 = vsel %vm492, %v328, 0
        %v497 = vsel %vm492, %v329, 0
        %v500 = vsel %vm492, %v330, 0
        %v503 = vsel %vm492, %v331, 0
        %505 = vmatprep.subr.bf16.mxu0 %v429
        %506 = vmatpush1.bf16.msra.mxu0 %v428
        %507 = vmatprep.subr.bf16.mxu0 %v437
        %508 = vmatpush1.bf16.msra.mxu0 %v436
        %509 = vmatprep.subr.bf16.mxu0 %v445
        %510 = vmatpush1.bf16.msra.mxu0 %v444
        %511 = vmatprep.subr.bf16.mxu0 %v453
        %512 = vmatpush1.bf16.msra.mxu0 %v452
        %513 = vmatprep.subr.bf16.mxu0 0
        %514 = vmatpush1.bf16.msra.mxu0 0
        %515 = vmatprep.subr.bf16.mxu0 0
        %516 = vmatpush1.bf16.msra.mxu0 0
        %517 = vmatprep.subr.bf16.mxu0 0
        %518 = vmatpush1.bf16.msra.mxu0 0
        %519 = vmatprep.subr.bf16.mxu0 0
        %520 = vmatpush1.bf16.msra.mxu0 0
        %521 = vmatprep.subr.bf16.mxu0 0
        %522 = vmatpush1.bf16.msra.mxu0 0
        %523 = vmatprep.subr.bf16.mxu0 0
        %524 = vmatpush1.bf16.msra.mxu0 0
        %525 = vmatprep.subr.bf16.mxu0 0
        %526 = vmatpush1.bf16.msra.mxu0 0
        %527 = vmatprep.subr.bf16.mxu0 0
        %528 = vmatpush1.bf16.msra.mxu0 0
        %529 = vmatprep.subr.bf16.mxu0 0
        %530 = vmatpush1.bf16.msra.mxu0 0
        %531 = vmatprep.subr.bf16.mxu0 0
        %532 = vmatpush1.bf16.msra.mxu0 0
        %533 = vmatprep.subr.bf16.mxu0 0
        %534 = vmatpush1.bf16.msra.mxu0 0
        %535 = vmatprep.subr.bf16.mxu0 0
        %536 = vmatpush1.bf16.msra.mxu0 0
        %537 = vmatprep.mubr.bf16.mxu0 0
        %538 = vmatmul.mubr.bf16.gmra.mrb[0].mxu0 %v494
        %v539 = vpop.f32.mrb[0].mxu0
        %v540 = vadd.f32 0.0, %v539
        %v541 = vpop.f32.mrb[0].mxu0
        %v542 = vadd.f32 0.0, %v541
        %v543 = vpop.f32.mrb[0].mxu0
        %v544 = vadd.f32 0.0, %v543
        %v545 = vpop.f32.mrb[0].mxu0
        %v546 = vadd.f32 0.0, %v545
        %547 = vmatprep.mubr.bf16.mxu0 0
        %548 = vmatmul.mubr.bf16.gmra.mrb[0].mxu0 %v497
        %v549 = vpop.f32.mrb[0].mxu0
        %v550 = vadd.f32 0.0, %v549
        %v551 = vpop.f32.mrb[0].mxu0
        %v552 = vadd.f32 0.0, %v551
        %v553 = vpop.f32.mrb[0].mxu0
        %v554 = vadd.f32 0.0, %v553
        %v555 = vpop.f32.mrb[0].mxu0
        %v556 = vadd.f32 0.0, %v555
        %557 = vmatprep.mubr.bf16.mxu0 0
        %558 = vmatmul.mubr.bf16.gmra.mrb[0].mxu0 %v500
        %v559 = vpop.f32.mrb[0].mxu0
        %v560 = vadd.f32 0.0, %v559
        %v561 = vpop.f32.mrb[0].mxu0
        %v562 = vadd.f32 0.0, %v561
        %v563 = vpop.f32.mrb[0].mxu0
        %v564 = vadd.f32 0.0, %v563
        %v565 = vpop.f32.mrb[0].mxu0
        %v566 = vadd.f32 0.0, %v565
        %567 = vmatprep.mubr.bf16.mxu0 0
        %568 = vmatmul.mubr.bf16.gmra.mrb[0].mxu0 %v503
        %v569 = vpop.f32.mrb[0].mxu0
        %v570 = vadd.f32 0.0, %v569
        %v571 = vpop.f32.mrb[0].mxu0
        %v572 = vadd.f32 0.0, %v571
        %v573 = vpop.f32.mrb[0].mxu0
        %v574 = vadd.f32 0.0, %v573
        %v575 = vpop.f32.mrb[0].mxu0
        %v576 = vadd.f32 0.0, %v575
        %577 = vdwg.mxu0
        %578 = vmatprep.subr.bf16.mxu0 %v431
        %579 = vmatpush1.bf16.msra.mxu0 %v430
        %580 = vmatprep.subr.bf16.mxu0 %v439
        %581 = vmatpush1.bf16.msra.mxu0 %v438
        %582 = vmatprep.subr.bf16.mxu0 %v447
        %583 = vmatpush1.bf16.msra.mxu0 %v446
        %584 = vmatprep.subr.bf16.mxu0 %v455
        %585 = vmatpush1.bf16.msra.mxu0 %v454
        %586 = vmatprep.subr.bf16.mxu0 0
        %587 = vmatpush1.bf16.msra.mxu0 0
        %588 = vmatprep.subr.bf16.mxu0 0
        %589 = vmatpush1.bf16.msra.mxu0 0
        %590 = vmatprep.subr.bf16.mxu0 0
        %591 = vmatpush1.bf16.msra.mxu0 0
        %592 = vmatprep.subr.bf16.mxu0 0
        %593 = vmatpush1.bf16.msra.mxu0 0
        %594 = vmatprep.subr.bf16.mxu0 0
        %595 = vmatpush1.bf16.msra.mxu0 0
        %596 = vmatprep.subr.bf16.mxu0 0
        %597 = vmatpush1.bf16.msra.mxu0 0
        %598 = vmatprep.subr.bf16.mxu0 0
        %599 = vmatpush1.bf16.msra.mxu0 0
        %600 = vmatprep.subr.bf16.mxu0 0
        %601 = vmatpush1.bf16.msra.mxu0 0
        %602 = vmatprep.subr.bf16.mxu0 0
        %603 = vmatpush1.bf16.msra.mxu0 0
        %604 = vmatprep.subr.bf16.mxu0 0
        %605 = vmatpush1.bf16.msra.mxu0 0
        %606 = vmatprep.subr.bf16.mxu0 0
        %607 = vmatpush1.bf16.msra.mxu0 0
        %608 = vmatprep.subr.bf16.mxu0 0
        %609 = vmatpush1.bf16.msra.mxu0 0
        %610 = vmatprep.mubr.bf16.mxu0 0
        %611 = vmatmul.mubr.bf16.gmra.mrb[0].mxu0 %v494
        %v612 = vpop.f32.mrb[0].mxu0
        %v613 = vadd.f32 0.0, %v612
        %v614 = vpop.f32.mrb[0].mxu0
        %v615 = vadd.f32 0.0, %v614
        %v616 = vpop.f32.mrb[0].mxu0
        %v617 = vadd.f32 0.0, %v616
        %v618 = vpop.f32.mrb[0].mxu0
        %v619 = vadd.f32 0.0, %v618
        %620 = vmatprep.mubr.bf16.mxu0 0
        %621 = vmatmul.mubr.bf16.gmra.mrb[0].mxu0 %v497
        %v622 = vpop.f32.mrb[0].mxu0
        %v623 = vadd.f32 0.0, %v622
        %v624 = vpop.f32.mrb[0].mxu0
        %v625 = vadd.f32 0.0, %v624
        %v626 = vpop.f32.mrb[0].mxu0
        %v627 = vadd.f32 0.0, %v626
        %v628 = vpop.f32.mrb[0].mxu0
        %v629 = vadd.f32 0.0, %v628
        %630 = vmatprep.mubr.bf16.mxu0 0
        %631 = vmatmul.mubr.bf16.gmra.mrb[0].mxu0 %v500
        %v632 = vpop.f32.mrb[0].mxu0
        %v633 = vadd.f32 0.0, %v632
        %v634 = vpop.f32.mrb[0].mxu0
        %v635 = vadd.f32 0.0, %v634
        %v636 = vpop.f32.mrb[0].mxu0
        %v637 = vadd.f32 0.0, %v636
        %v638 = vpop.f32.mrb[0].mxu0
        %v639 = vadd.f32 0.0, %v638
        %640 = vmatprep.mubr.bf16.mxu0 0
        %641 = vmatmul.mubr.bf16.gmra.mrb[0].mxu0 %v503
        %v642 = vpop.f32.mrb[0].mxu0
        %v643 = vadd.f32 0.0, %v642
        %v644 = vpop.f32.mrb[0].mxu0
        %v645 = vadd.f32 0.0, %v644
        %v646 = vpop.f32.mrb[0].mxu0
        %v647 = vadd.f32 0.0, %v646
        %v648 = vpop.f32.mrb[0].mxu0
        %v649 = vadd.f32 0.0, %v648
        %650 = vdwg.mxu0
        %651 = vmatprep.subr.bf16.mxu0 %v433
        %652 = vmatpush1.bf16.msra.mxu0 %v432
        %653 = vmatprep.subr.bf16.mxu0 %v441
        %654 = vmatpush1.bf16.msra.mxu0 %v440
        %655 = vmatprep.subr.bf16.mxu0 %v449
        %656 = vmatpush1.bf16.msra.mxu0 %v448
        %657 = vmatprep.subr.bf16.mxu0 %v457
        %658 = vmatpush1.bf16.msra.mxu0 %v456
        %659 = vmatprep.subr.bf16.mxu0 0
        %660 = vmatpush1.bf16.msra.mxu0 0
        %661 = vmatprep.subr.bf16.mxu0 0
        %662 = vmatpush1.bf16.msra.mxu0 0
        %663 = vmatprep.subr.bf16.mxu0 0
        %664 = vmatpush1.bf16.msra.mxu0 0
        %665 = vmatprep.subr.bf16.mxu0 0
        %666 = vmatpush1.bf16.msra.mxu0 0
        %667 = vmatprep.subr.bf16.mxu0 0
        %668 = vmatpush1.bf16.msra.mxu0 0
        %669 = vmatprep.subr.bf16.mxu0 0
        %670 = vmatpush1.bf16.msra.mxu0 0
        %671 = vmatprep.subr.bf16.mxu0 0
        %672 = vmatpush1.bf16.msra.mxu0 0
        %673 = vmatprep.subr.bf16.mxu0 0
        %674 = vmatpush1.bf16.msra.mxu0 0
        %675 = vmatprep.subr.bf16.mxu0 0
        %676 = vmatpush1.bf16.msra.mxu0 0
        %677 = vmatprep.subr.bf16.mxu0 0
        %678 = vmatpush1.bf16.msra.mxu0 0
        %679 = vmatprep.subr.bf16.mxu0 0
        %680 = vmatpush1.bf16.msra.mxu0 0
        %681 = vmatprep.subr.bf16.mxu0 0
        %682 = vmatpush1.bf16.msra.mxu0 0
        %683 = vmatprep.mubr.bf16.mxu0 0
        %684 = vmatmul.mubr.bf16.gmra.mrb[0].mxu0 %v494
        %v685 = vpop.f32.mrb[0].mxu0
        %v686 = vadd.f32 0.0, %v685
        %v687 = vpop.f32.mrb[0].mxu0
        %v688 = vadd.f32 0.0, %v687
        %v689 = vpop.f32.mrb[0].mxu0
        %v690 = vadd.f32 0.0, %v689
        %v691 = vpop.f32.mrb[0].mxu0
        %v692 = vadd.f32 0.0, %v691
        %693 = vmatprep.mubr.bf16.mxu0 0
        %694 = vmatmul.mubr.bf16.gmra.mrb[0].mxu0 %v497
        %v695 = vpop.f32.mrb[0].mxu0
        %v696 = vadd.f32 0.0, %v695
        %v697 = vpop.f32.mrb[0].mxu0
        %v698 = vadd.f32 0.0, %v697
        %v699 = vpop.f32.mrb[0].mxu0
        %v700 = vadd.f32 0.0, %v699
        %v701 = vpop.f32.mrb[0].mxu0
        %v702 = vadd.f32 0.0, %v701
        %703 = vmatprep.mubr.bf16.mxu0 0
        %704 = vmatmul.mubr.bf16.gmra.mrb[0].mxu0 %v500
        %v705 = vpop.f32.mrb[0].mxu0
        %v706 = vadd.f32 0.0, %v705
        %v707 = vpop.f32.mrb[0].mxu0
        %v708 = vadd.f32 0.0, %v707
        %v709 = vpop.f32.mrb[0].mxu0
        %v710 = vadd.f32 0.0, %v709
        %v711 = vpop.f32.mrb[0].mxu0
        %v712 = vadd.f32 0.0, %v711
        %713 = vmatprep.mubr.bf16.mxu0 0
        %714 = vmatmul.mubr.bf16.gmra.mrb[0].mxu0 %v503
        %v715 = vpop.f32.mrb[0].mxu0
        %v716 = vadd.f32 0.0, %v715
        %v717 = vpop.f32.mrb[0].mxu0
        %v718 = vadd.f32 0.0, %v717
        %v719 = vpop.f32.mrb[0].mxu0
        %v720 = vadd.f32 0.0, %v719
        %v721 = vpop.f32.mrb[0].mxu0
        %v722 = vadd.f32 0.0, %v721
        %723 = vdwg.mxu0
        %724 = vmatprep.subr.bf16.mxu0 %v435
        %725 = vmatpush1.bf16.msra.mxu0 %v434
        %726 = vmatprep.subr.bf16.mxu0 %v443
        %727 = vmatpush1.bf16.msra.mxu0 %v442
        %728 = vmatprep.subr.bf16.mxu0 %v451
        %729 = vmatpush1.bf16.msra.mxu0 %v450
        %730 = vmatprep.subr.bf16.mxu0 %v459
        %731 = vmatpush1.bf16.msra.mxu0 %v458
        %732 = vmatprep.subr.bf16.mxu0 0
        %733 = vmatpush1.bf16.msra.mxu0 0
        %734 = vmatprep.subr.bf16.mxu0 0
        %735 = vmatpush1.bf16.msra.mxu0 0
        %736 = vmatprep.subr.bf16.mxu0 0
        %737 = vmatpush1.bf16.msra.mxu0 0
        %738 = vmatprep.subr.bf16.mxu0 0
        %739 = vmatpush1.bf16.msra.mxu0 0
        %740 = vmatprep.subr.bf16.mxu0 0
        %741 = vmatpush1.bf16.msra.mxu0 0
        %742 = vmatprep.subr.bf16.mxu0 0
        %743 = vmatpush1.bf16.msra.mxu0 0
        %744 = vmatprep.subr.bf16.mxu0 0
        %745 = vmatpush1.bf16.msra.mxu0 0
        %746 = vmatprep.subr.bf16.mxu0 0
        %747 = vmatpush1.bf16.msra.mxu0 0
        %748 = vmatprep.subr.bf16.mxu0 0
        %749 = vmatpush1.bf16.msra.mxu0 0
        %750 = vmatprep.subr.bf16.mxu0 0
        %751 = vmatpush1.bf16.msra.mxu0 0
        %752 = vmatprep.subr.bf16.mxu0 0
        %753 = vmatpush1.bf16.msra.mxu0 0
        %754 = vmatprep.subr.bf16.mxu0 0
        %755 = vmatpush1.bf16.msra.mxu0 0
        %756 = vmatprep.mubr.bf16.mxu0 0
        %757 = vmatmul.mubr.bf16.gmra.mrb[0].mxu0 %v494
        %v758 = vpop.f32.mrb[0].mxu0
        %v759 = vadd.f32 0.0, %v758
        %v760 = vpop.f32.mrb[0].mxu0
        %v761 = vadd.f32 0.0, %v760
        %v762 = vpop.f32.mrb[0].mxu0
        %v763 = vadd.f32 0.0, %v762
        %v764 = vpop.f32.mrb[0].mxu0
        %v765 = vadd.f32 0.0, %v764
        %766 = vmatprep.mubr.bf16.mxu0 0
        %767 = vmatmul.mubr.bf16.gmra.mrb[0].mxu0 %v497
        %v768 = vpop.f32.mrb[0].mxu0
        %v769 = vadd.f32 0.0, %v768
        %v770 = vpop.f32.mrb[0].mxu0
        %v771 = vadd.f32 0.0, %v770
        %v772 = vpop.f32.mrb[0].mxu0
        %v773 = vadd.f32 0.0, %v772
        %v774 = vpop.f32.mrb[0].mxu0
        %v775 = vadd.f32 0.0, %v774
        %776 = vmatprep.mubr.bf16.mxu0 0
        %777 = vmatmul.mubr.bf16.gmra.mrb[0].mxu0 %v500
        %v778 = vpop.f32.mrb[0].mxu0
        %v779 = vadd.f32 0.0, %v778
        %v780 = vpop.f32.mrb[0].mxu0
        %v781 = vadd.f32 0.0, %v780
        %v782 = vpop.f32.mrb[0].mxu0
        %v783 = vadd.f32 0.0, %v782
        %v784 = vpop.f32.mrb[0].mxu0
        %v785 = vadd.f32 0.0, %v784
        %786 = vmatprep.mubr.bf16.mxu0 0
        %787 = vmatmul.mubr.bf16.gmra.mrb[0].mxu0 %v503
        %v788 = vpop.f32.mrb[0].mxu0
        %v789 = vadd.f32 0.0, %v788
        %v790 = vpop.f32.mrb[0].mxu0
        %v791 = vadd.f32 0.0, %v790
        %v792 = vpop.f32.mrb[0].mxu0
        %v793 = vadd.f32 0.0, %v792
        %v794 = vpop.f32.mrb[0].mxu0
        %v795 = vadd.f32 0.0, %v794
        %796 = vdwg.mxu0
        %v797 = vmax.f32 %v540, 0.0
        %v798 = vmax.f32 %v542, 0.0
        %v799 = vmax.f32 %v613, 0.0
        %v800 = vmax.f32 %v615, 0.0
        %v801 = vmax.f32 %v686, 0.0
        %v802 = vmax.f32 %v688, 0.0
        %v803 = vmax.f32 %v759, 0.0
        %v804 = vmax.f32 %v761, 0.0
        %v805 = vmax.f32 %v544, 0.0
        %v806 = vmax.f32 %v546, 0.0
        %v807 = vmax.f32 %v617, 0.0
        %v808 = vmax.f32 %v619, 0.0
        %v809 = vmax.f32 %v690, 0.0
        %v810 = vmax.f32 %v692, 0.0
        %v811 = vmax.f32 %v763, 0.0
        %v812 = vmax.f32 %v765, 0.0
        %v813 = vmax.f32 %v550, 0.0
        %v814 = vmax.f32 %v552, 0.0
        %v815 = vmax.f32 %v623, 0.0
        %v816 = vmax.f32 %v625, 0.0
        %v817 = vmax.f32 %v696, 0.0
        %v818 = vmax.f32 %v698, 0.0
        %v819 = vmax.f32 %v769, 0.0
        %v820 = vmax.f32 %v771, 0.0
        %v821 = vmax.f32 %v554, 0.0
        %v822 = vmax.f32 %v556, 0.0
        %v823 = vmax.f32 %v627, 0.0
        %v824 = vmax.f32 %v629, 0.0
        %v825 = vmax.f32 %v700, 0.0
        %v826 = vmax.f32 %v702, 0.0
        %v827 = vmax.f32 %v773, 0.0
        %v828 = vmax.f32 %v775, 0.0
        %v829 = vmax.f32 %v560, 0.0
        %v830 = vmax.f32 %v562, 0.0
        %v831 = vmax.f32 %v633, 0.0
        %v832 = vmax.f32 %v635, 0.0
        %v833 = vmax.f32 %v706, 0.0
        %v834 = vmax.f32 %v708, 0.0
        %v835 = vmax.f32 %v779, 0.0
        %v836 = vmax.f32 %v781, 0.0
        %v837 = vmax.f32 %v564, 0.0
        %v838 = vmax.f32 %v566, 0.0
        %v839 = vmax.f32 %v637, 0.0
        %v840 = vmax.f32 %v639, 0.0
        %v841 = vmax.f32 %v710, 0.0
        %v842 = vmax.f32 %v712, 0.0
        %v843 = vmax.f32 %v783, 0.0
        %v844 = vmax.f32 %v785, 0.0
        %v845 = vmax.f32 %v570, 0.0
        %v846 = vmax.f32 %v572, 0.0
        %v847 = vmax.f32 %v643, 0.0
        %v848 = vmax.f32 %v645, 0.0
        %v849 = vmax.f32 %v716, 0.0
        %v850 = vmax.f32 %v718, 0.0
        %v851 = vmax.f32 %v789, 0.0
        %v852 = vmax.f32 %v791, 0.0
        %v853 = vmax.f32 %v574, 0.0
        %v854 = vmax.f32 %v576, 0.0
        %v855 = vmax.f32 %v647, 0.0
        %v856 = vmax.f32 %v649, 0.0
        %v857 = vmax.f32 %v720, 0.0
        %v858 = vmax.f32 %v722, 0.0
        %v859 = vmax.f32 %v793, 0.0
        %v860 = vmax.f32 %v795, 0.0
        %v861 = vpack.c.bf16 %v805, %v797
        %v862 = vpack.c.bf16 %v806, %v798
        %v863 = vpack.c.bf16 %v807, %v799
        %v864 = vpack.c.bf16 %v808, %v800
        %v865 = vpack.c.bf16 %v809, %v801
        %v866 = vpack.c.bf16 %v810, %v802
        %v867 = vpack.c.bf16 %v811, %v803
        %v868 = vpack.c.bf16 %v812, %v804
        %v869 = vpack.c.bf16 %v821, %v813
        %v870 = vpack.c.bf16 %v822, %v814
        %v871 = vpack.c.bf16 %v823, %v815
        %v872 = vpack.c.bf16 %v824, %v816
        %v873 = vpack.c.bf16 %v825, %v817
        %v874 = vpack.c.bf16 %v826, %v818
        %v875 = vpack.c.bf16 %v827, %v819
        %v876 = vpack.c.bf16 %v828, %v820
        %v877 = vpack.c.bf16 %v837, %v829
        %v878 = vpack.c.bf16 %v838, %v830
        %v879 = vpack.c.bf16 %v839, %v831
        %v880 = vpack.c.bf16 %v840, %v832
        %v881 = vpack.c.bf16 %v841, %v833
        %v882 = vpack.c.bf16 %v842, %v834
        %v883 = vpack.c.bf16 %v843, %v835
        %v884 = vpack.c.bf16 %v844, %v836
        %v885 = vpack.c.bf16 %v853, %v845
        %v886 = vpack.c.bf16 %v854, %v846
        %v887 = vpack.c.bf16 %v855, %v847
        %v888 = vpack.c.bf16 %v856, %v848
        %v889 = vpack.c.bf16 %v857, %v849
        %v890 = vpack.c.bf16 %v858, %v850
        %v891 = vpack.c.bf16 %v859, %v851
        %v892 = vpack.c.bf16 %v860, %v852
        %v893 = vld [vmem:[%s2] sm:$0xf]
        %v894 = vld [vmem:[%s2 + $0x4] sm:$0xf]
        %v895 = vld [vmem:[%s2 + $0x8] sm:$0xf]
        %v896 = vld [vmem:[%s2 + $0xc] sm:$0xf]
        %v897 = vld [vmem:[%s2 + $0x10] sm:$0xf]
        %v898 = vld [vmem:[%s2 + $0x14] sm:$0xf]
        %v899 = vld [vmem:[%s2 + $0x18] sm:$0xf]
        %v900 = vld [vmem:[%s2 + $0x1c] sm:$0xf]
        %v901 = vld [vmem:[%s2 + $0x20] sm:$0xf]
        %v902 = vld [vmem:[%s2 + $0x24] sm:$0xf]
        %v903 = vld [vmem:[%s2 + $0x28] sm:$0xf]
        %v904 = vld [vmem:[%s2 + $0x2c] sm:$0xf]
        %v905 = vld [vmem:[%s2 + $0x30] sm:$0xf]
        %v906 = vld [vmem:[%s2 + $0x34] sm:$0xf]
        %v907 = vld [vmem:[%s2 + $0x38] sm:$0xf]
        %v908 = vld [vmem:[%s2 + $0x3c] sm:$0xf]
        %v909 = vld [vmem:[%s2 + $0x40] sm:$0xf]
        %v910 = vld [vmem:[%s2 + $0x44] sm:$0xf]
        %v911 = vld [vmem:[%s2 + $0x48] sm:$0xf]
        %v912 = vld [vmem:[%s2 + $0x4c] sm:$0xf]
        %v913 = vld [vmem:[%s2 + $0x50] sm:$0xf]
        %v914 = vld [vmem:[%s2 + $0x54] sm:$0xf]
        %v915 = vld [vmem:[%s2 + $0x58] sm:$0xf]
        %v916 = vld [vmem:[%s2 + $0x5c] sm:$0xf]
        %v917 = vld [vmem:[%s2 + $0x60] sm:$0xf]
        %v918 = vld [vmem:[%s2 + $0x64] sm:$0xf]
        %v919 = vld [vmem:[%s2 + $0x68] sm:$0xf]
        %v920 = vld [vmem:[%s2 + $0x6c] sm:$0xf]
        %v921 = vld [vmem:[%s2 + $0x70] sm:$0xf]
        %v922 = vld [vmem:[%s2 + $0x74] sm:$0xf]
        %v923 = vld [vmem:[%s2 + $0x78] sm:$0xf]
        %v924 = vld [vmem:[%s2 + $0x7c] sm:$0xf]
        %v925 = vld [vmem:[%s2 + $0x80] sm:$0xf]
        %v926 = vld [vmem:[%s2 + $0x84] sm:$0xf]
        %v927 = vld [vmem:[%s2 + $0x88] sm:$0xf]
        %v928 = vld [vmem:[%s2 + $0x8c] sm:$0xf]
        %v929 = vld [vmem:[%s2 + $0x90] sm:$0xf]
        %v930 = vld [vmem:[%s2 + $0x94] sm:$0xf]
        %v931 = vld [vmem:[%s2 + $0x98] sm:$0xf]
        %v932 = vld [vmem:[%s2 + $0x9c] sm:$0xf]
        %v933 = vld [vmem:[%s2 + $0xa0] sm:$0xf]
        %v934 = vld [vmem:[%s2 + $0xa4] sm:$0xf]
        %v935 = vld [vmem:[%s2 + $0xa8] sm:$0xf]
        %v936 = vld [vmem:[%s2 + $0xac] sm:$0xf]
        %v937 = vld [vmem:[%s2 + $0xb0] sm:$0xf]
        %v938 = vld [vmem:[%s2 + $0xb4] sm:$0xf]
        %v939 = vld [vmem:[%s2 + $0xb8] sm:$0xf]
        %v940 = vld [vmem:[%s2 + $0xbc] sm:$0xf]
        %v941 = vld [vmem:[%s2 + $0xc0] sm:$0xf]
        %v942 = vld [vmem:[%s2 + $0xc4] sm:$0xf]
        %v943 = vld [vmem:[%s2 + $0xc8] sm:$0xf]
        %v944 = vld [vmem:[%s2 + $0xcc] sm:$0xf]
        %v945 = vld [vmem:[%s2 + $0xd0] sm:$0xf]
        %v946 = vld [vmem:[%s2 + $0xd4] sm:$0xf]
        %v947 = vld [vmem:[%s2 + $0xd8] sm:$0xf]
        %v948 = vld [vmem:[%s2 + $0xdc] sm:$0xf]
        %v949 = vld [vmem:[%s2 + $0xe0] sm:$0xf]
        %v950 = vld [vmem:[%s2 + $0xe4] sm:$0xf]
        %v951 = vld [vmem:[%s2 + $0xe8] sm:$0xf]
        %v952 = vld [vmem:[%s2 + $0xec] sm:$0xf]
        %v953 = vld [vmem:[%s2 + $0xf0] sm:$0xf]
        %v954 = vld [vmem:[%s2 + $0xf4] sm:$0xf]
        %v955 = vld [vmem:[%s2 + $0xf8] sm:$0xf]
        %v956 = vld [vmem:[%s2 + $0xfc] sm:$0xf]
        %v957 = vld [vmem:[%s2 + $0x100] sm:$0xf]
        %v958 = vld [vmem:[%s2 + $0x104] sm:$0xf]
        %v959 = vld [vmem:[%s2 + $0x108] sm:$0xf]
        %v960 = vld [vmem:[%s2 + $0x10c] sm:$0xf]
        %v961 = vld [vmem:[%s2 + $0x110] sm:$0xf]
        %v962 = vld [vmem:[%s2 + $0x114] sm:$0xf]
        %v963 = vld [vmem:[%s2 + $0x118] sm:$0xf]
        %v964 = vld [vmem:[%s2 + $0x11c] sm:$0xf]
        %v965 = vld [vmem:[%s2 + $0x120] sm:$0xf]
        %v966 = vld [vmem:[%s2 + $0x124] sm:$0xf]
        %v967 = vld [vmem:[%s2 + $0x128] sm:$0xf]
        %v968 = vld [vmem:[%s2 + $0x12c] sm:$0xf]
        %v969 = vld [vmem:[%s2 + $0x130] sm:$0xf]
        %v970 = vld [vmem:[%s2 + $0x134] sm:$0xf]
        %v971 = vld [vmem:[%s2 + $0x138] sm:$0xf]
        %v972 = vld [vmem:[%s2 + $0x13c] sm:$0xf]
        %v973 = vld [vmem:[%s2 + $0x140] sm:$0xf]
        %v974 = vld [vmem:[%s2 + $0x144] sm:$0xf]
        %v975 = vld [vmem:[%s2 + $0x148] sm:$0xf]
        %v976 = vld [vmem:[%s2 + $0x14c] sm:$0xf]
        %v977 = vld [vmem:[%s2 + $0x150] sm:$0xf]
        %v978 = vld [vmem:[%s2 + $0x154] sm:$0xf]
        %v979 = vld [vmem:[%s2 + $0x158] sm:$0xf]
        %v980 = vld [vmem:[%s2 + $0x15c] sm:$0xf]
        %v981 = vld [vmem:[%s2 + $0x160] sm:$0xf]
        %v982 = vld [vmem:[%s2 + $0x164] sm:$0xf]
        %v983 = vld [vmem:[%s2 + $0x168] sm:$0xf]
        %v984 = vld [vmem:[%s2 + $0x16c] sm:$0xf]
        %v985 = vld [vmem:[%s2 + $0x170] sm:$0xf]
        %v986 = vld [vmem:[%s2 + $0x174] sm:$0xf]
        %v987 = vld [vmem:[%s2 + $0x178] sm:$0xf]
        %v988 = vld [vmem:[%s2 + $0x17c] sm:$0xf]
        %v989 = vld [vmem:[%s2 + $0x180] sm:$0xf]
        %v990 = vld [vmem:[%s2 + $0x184] sm:$0xf]
        %v991 = vld [vmem:[%s2 + $0x188] sm:$0xf]
        %v992 = vld [vmem:[%s2 + $0x18c] sm:$0xf]
        %v993 = vld [vmem:[%s2 + $0x190] sm:$0xf]
        %v994 = vld [vmem:[%s2 + $0x194] sm:$0xf]
        %v995 = vld [vmem:[%s2 + $0x198] sm:$0xf]
        %v996 = vld [vmem:[%s2 + $0x19c] sm:$0xf]
        %v997 = vld [vmem:[%s2 + $0x1a0] sm:$0xf]
        %v998 = vld [vmem:[%s2 + $0x1a4] sm:$0xf]
        %v999 = vld [vmem:[%s2 + $0x1a8] sm:$0xf]
        %v1000 = vld [vmem:[%s2 + $0x1ac] sm:$0xf]
        %v1001 = vld [vmem:[%s2 + $0x1b0] sm:$0xf]
        %v1002 = vld [vmem:[%s2 + $0x1b4] sm:$0xf]
        %v1003 = vld [vmem:[%s2 + $0x1b8] sm:$0xf]
        %v1004 = vld [vmem:[%s2 + $0x1bc] sm:$0xf]
        %v1005 = vld [vmem:[%s2 + $0x1c0] sm:$0xf]
        %v1006 = vld [vmem:[%s2 + $0x1c4] sm:$0xf]
        %v1007 = vld [vmem:[%s2 + $0x1c8] sm:$0xf]
        %v1008 = vld [vmem:[%s2 + $0x1cc] sm:$0xf]
        %v1009 = vld [vmem:[%s2 + $0x1d0] sm:$0xf]
        %v1010 = vld [vmem:[%s2 + $0x1d4] sm:$0xf]
        %v1011 = vld [vmem:[%s2 + $0x1d8] sm:$0xf]
        %v1012 = vld [vmem:[%s2 + $0x1dc] sm:$0xf]
        %v1013 = vld [vmem:[%s2 + $0x1e0] sm:$0xf]
        %v1014 = vld [vmem:[%s2 + $0x1e4] sm:$0xf]
        %v1015 = vld [vmem:[%s2 + $0x1e8] sm:$0xf]
        %v1016 = vld [vmem:[%s2 + $0x1ec] sm:$0xf]
        %v1017 = vld [vmem:[%s2 + $0x1f0] sm:$0xf]
        %v1018 = vld [vmem:[%s2 + $0x1f4] sm:$0xf]
        %v1019 = vld [vmem:[%s2 + $0x1f8] sm:$0xf]
        %v1020 = vld [vmem:[%s2 + $0x1fc] sm:$0xf]
        %v1021 = vld [vmem:[%s3] sm:$0x1]
        %v1023 = vlaneseq
        %v1024 = vshrl.u32 %v1023, 7
        %v1025 = vsub.s32 0, %v1024
        %v1026 = vrot.slane %v1021, %v1025
        %v1156 = vunpack.c.l.b16 %v893
        %v1157 = vunpack.c.l.b16 %v894
        %v1158 = vunpack.c.l.b16 %v895
        %v1159 = vunpack.c.l.b16 %v896
        %v1160 = vunpack.c.l.b16 %v897
        %v1161 = vunpack.c.l.b16 %v898
        %v1162 = vunpack.c.l.b16 %v899
        %v1163 = vunpack.c.l.b16 %v900
        %v1164 = vunpack.c.l.b16 %v901
        %v1165 = vunpack.c.l.b16 %v902
        %v1166 = vunpack.c.l.b16 %v903
        %v1167 = vunpack.c.l.b16 %v904
        %v1168 = vunpack.c.l.b16 %v905
        %v1169 = vunpack.c.l.b16 %v906
        %v1170 = vunpack.c.l.b16 %v907
        %v1171 = vunpack.c.l.b16 %v908
        %v1172 = vunpack.c.l.b16 %v909
        %v1173 = vunpack.c.l.b16 %v910
        %v1174 = vunpack.c.l.b16 %v911
        %v1175 = vunpack.c.l.b16 %v912
        %v1176 = vunpack.c.l.b16 %v913
        %v1177 = vunpack.c.l.b16 %v914
        %v1178 = vunpack.c.l.b16 %v915
        %v1179 = vunpack.c.l.b16 %v916
        %v1180 = vunpack.c.l.b16 %v917
        %v1181 = vunpack.c.l.b16 %v918
        %v1182 = vunpack.c.l.b16 %v919
        %v1183 = vunpack.c.l.b16 %v920
        %v1184 = vunpack.c.l.b16 %v921
        %v1185 = vunpack.c.l.b16 %v922
        %v1186 = vunpack.c.l.b16 %v923
        %v1187 = vunpack.c.l.b16 %v924
        %v1188 = vunpack.c.l.b16 %v925
        %v1189 = vunpack.c.l.b16 %v926
        %v1190 = vunpack.c.l.b16 %v927
        %v1191 = vunpack.c.l.b16 %v928
        %v1192 = vunpack.c.l.b16 %v929
        %v1193 = vunpack.c.l.b16 %v930
        %v1194 = vunpack.c.l.b16 %v931
        %v1195 = vunpack.c.l.b16 %v932
        %v1196 = vunpack.c.l.b16 %v933
        %v1197 = vunpack.c.l.b16 %v934
        %v1198 = vunpack.c.l.b16 %v935
        %v1199 = vunpack.c.l.b16 %v936
        %v1200 = vunpack.c.l.b16 %v937
        %v1201 = vunpack.c.l.b16 %v938
        %v1202 = vunpack.c.l.b16 %v939
        %v1203 = vunpack.c.l.b16 %v940
        %v1204 = vunpack.c.l.b16 %v941
        %v1205 = vunpack.c.l.b16 %v942
        %v1206 = vunpack.c.l.b16 %v943
        %v1207 = vunpack.c.l.b16 %v944
        %v1208 = vunpack.c.l.b16 %v945
        %v1209 = vunpack.c.l.b16 %v946
        %v1210 = vunpack.c.l.b16 %v947
        %v1211 = vunpack.c.l.b16 %v948
        %v1212 = vunpack.c.l.b16 %v949
        %v1213 = vunpack.c.l.b16 %v950
        %v1214 = vunpack.c.l.b16 %v951
        %v1215 = vunpack.c.l.b16 %v952
        %v1216 = vunpack.c.l.b16 %v953
        %v1217 = vunpack.c.l.b16 %v954
        %v1218 = vunpack.c.l.b16 %v955
        %v1219 = vunpack.c.l.b16 %v956
        %v1220 = vunpack.c.l.b16 %v957
        %v1221 = vunpack.c.l.b16 %v958
        %v1222 = vunpack.c.l.b16 %v959
        %v1223 = vunpack.c.l.b16 %v960
        %v1224 = vunpack.c.l.b16 %v961
        %v1225 = vunpack.c.l.b16 %v962
        %v1226 = vunpack.c.l.b16 %v963
        %v1227 = vunpack.c.l.b16 %v964
        %v1228 = vunpack.c.l.b16 %v965
        %v1229 = vunpack.c.l.b16 %v966
        %v1230 = vunpack.c.l.b16 %v967
        %v1231 = vunpack.c.l.b16 %v968
        %v1232 = vunpack.c.l.b16 %v969
        %v1233 = vunpack.c.l.b16 %v970
        %v1234 = vunpack.c.l.b16 %v971
        %v1235 = vunpack.c.l.b16 %v972
        %v1236 = vunpack.c.l.b16 %v973
        %v1237 = vunpack.c.l.b16 %v974
        %v1238 = vunpack.c.l.b16 %v975
        %v1239 = vunpack.c.l.b16 %v976
        %v1240 = vunpack.c.l.b16 %v977
        %v1241 = vunpack.c.l.b16 %v978
        %v1242 = vunpack.c.l.b16 %v979
        %v1243 = vunpack.c.l.b16 %v980
        %v1244 = vunpack.c.l.b16 %v981
        %v1245 = vunpack.c.l.b16 %v982
        %v1246 = vunpack.c.l.b16 %v983
        %v1247 = vunpack.c.l.b16 %v984
        %v1248 = vunpack.c.l.b16 %v985
        %v1249 = vunpack.c.l.b16 %v986
        %v1250 = vunpack.c.l.b16 %v987
        %v1251 = vunpack.c.l.b16 %v988
        %v1252 = vunpack.c.l.b16 %v989
        %v1253 = vunpack.c.l.b16 %v990
        %v1254 = vunpack.c.l.b16 %v991
        %v1255 = vunpack.c.l.b16 %v992
        %v1256 = vunpack.c.l.b16 %v993
        %v1257 = vunpack.c.l.b16 %v994
        %v1258 = vunpack.c.l.b16 %v995
        %v1259 = vunpack.c.l.b16 %v996
        %v1260 = vunpack.c.l.b16 %v997
        %v1261 = vunpack.c.l.b16 %v998
        %v1262 = vunpack.c.l.b16 %v999
        %v1263 = vunpack.c.l.b16 %v1000
        %v1264 = vunpack.c.l.b16 %v1001
        %v1265 = vunpack.c.l.b16 %v1002
        %v1266 = vunpack.c.l.b16 %v1003
        %v1267 = vunpack.c.l.b16 %v1004
        %v1268 = vunpack.c.l.b16 %v1005
        %v1269 = vunpack.c.l.b16 %v1006
        %v1270 = vunpack.c.l.b16 %v1007
        %v1271 = vunpack.c.l.b16 %v1008
        %v1272 = vunpack.c.l.b16 %v1009
        %v1273 = vunpack.c.l.b16 %v1010
        %v1274 = vunpack.c.l.b16 %v1011
        %v1275 = vunpack.c.l.b16 %v1012
        %v1276 = vunpack.c.l.b16 %v1013
        %v1277 = vunpack.c.l.b16 %v1014
        %v1278 = vunpack.c.l.b16 %v1015
        %v1279 = vunpack.c.l.b16 %v1016
        %v1280 = vunpack.c.l.b16 %v1017
        %v1281 = vunpack.c.l.b16 %v1018
        %v1282 = vunpack.c.l.b16 %v1019
        %v1283 = vunpack.c.l.b16 %v1020
        %v1284 = vpack.c.b16 %v1157, %v1156
        %v1285 = vpack.c.b16 %v1159, %v1158
        %v1286 = vpack.c.b16 %v1161, %v1160
        %v1287 = vpack.c.b16 %v1163, %v1162
        %v1288 = vpack.c.b16 %v1165, %v1164
        %v1289 = vpack.c.b16 %v1167, %v1166
        %v1290 = vpack.c.b16 %v1169, %v1168
        %v1291 = vpack.c.b16 %v1171, %v1170
        %v1292 = vpack.c.b16 %v1173, %v1172
        %v1293 = vpack.c.b16 %v1175, %v1174
        %v1294 = vpack.c.b16 %v1177, %v1176
        %v1295 = vpack.c.b16 %v1179, %v1178
        %v1296 = vpack.c.b16 %v1181, %v1180
        %v1297 = vpack.c.b16 %v1183, %v1182
        %v1298 = vpack.c.b16 %v1185, %v1184
        %v1299 = vpack.c.b16 %v1187, %v1186
        %v1300 = vpack.c.b16 %v1189, %v1188
        %v1301 = vpack.c.b16 %v1191, %v1190
        %v1302 = vpack.c.b16 %v1193, %v1192
        %v1303 = vpack.c.b16 %v1195, %v1194
        %v1304 = vpack.c.b16 %v1197, %v1196
        %v1305 = vpack.c.b16 %v1199, %v1198
        %v1306 = vpack.c.b16 %v1201, %v1200
        %v1307 = vpack.c.b16 %v1203, %v1202
        %v1308 = vpack.c.b16 %v1205, %v1204
        %v1309 = vpack.c.b16 %v1207, %v1206
        %v1310 = vpack.c.b16 %v1209, %v1208
        %v1311 = vpack.c.b16 %v1211, %v1210
        %v1312 = vpack.c.b16 %v1213, %v1212
        %v1313 = vpack.c.b16 %v1215, %v1214
        %v1314 = vpack.c.b16 %v1217, %v1216
        %v1315 = vpack.c.b16 %v1219, %v1218
        %v1316 = vpack.c.b16 %v1221, %v1220
        %v1317 = vpack.c.b16 %v1223, %v1222
        %v1318 = vpack.c.b16 %v1225, %v1224
        %v1319 = vpack.c.b16 %v1227, %v1226
        %v1320 = vpack.c.b16 %v1229, %v1228
        %v1321 = vpack.c.b16 %v1231, %v1230
        %v1322 = vpack.c.b16 %v1233, %v1232
        %v1323 = vpack.c.b16 %v1235, %v1234
        %v1324 = vpack.c.b16 %v1237, %v1236
        %v1325 = vpack.c.b16 %v1239, %v1238
        %v1326 = vpack.c.b16 %v1241, %v1240
        %v1327 = vpack.c.b16 %v1243, %v1242
        %v1328 = vpack.c.b16 %v1245, %v1244
        %v1329 = vpack.c.b16 %v1247, %v1246
        %v1330 = vpack.c.b16 %v1249, %v1248
        %v1331 = vpack.c.b16 %v1251, %v1250
        %v1332 = vpack.c.b16 %v1253, %v1252
        %v1333 = vpack.c.b16 %v1255, %v1254
        %v1334 = vpack.c.b16 %v1257, %v1256
        %v1335 = vpack.c.b16 %v1259, %v1258
        %v1336 = vpack.c.b16 %v1261, %v1260
        %v1337 = vpack.c.b16 %v1263, %v1262
        %v1338 = vpack.c.b16 %v1265, %v1264
        %v1339 = vpack.c.b16 %v1267, %v1266
        %v1340 = vpack.c.b16 %v1269, %v1268
        %v1341 = vpack.c.b16 %v1271, %v1270
        %v1342 = vpack.c.b16 %v1273, %v1272
        %v1343 = vpack.c.b16 %v1275, %v1274
        %v1344 = vpack.c.b16 %v1277, %v1276
        %v1345 = vpack.c.b16 %v1279, %v1278
        %v1346 = vpack.c.b16 %v1281, %v1280
        %v1347 = vpack.c.b16 %v1283, %v1282
        %1412 = vmatprep.subr.bf16.mxu0 0
        %1413 = vmatpush1.bf16.msra.mxu0 %v1284
        %1414 = vmatprep.subr.bf16.mxu0 0
        %1415 = vmatpush1.bf16.msra.mxu0 %v1285
        %1416 = vmatprep.subr.bf16.mxu0 0
        %1417 = vmatpush1.bf16.msra.mxu0 %v1286
        %1418 = vmatprep.subr.bf16.mxu0 0
        %1419 = vmatpush1.bf16.msra.mxu0 %v1287
        %1420 = vmatprep.subr.bf16.mxu0 0
        %1421 = vmatpush1.bf16.msra.mxu0 %v1288
        %1422 = vmatprep.subr.bf16.mxu0 0
        %1423 = vmatpush1.bf16.msra.mxu0 %v1289
        %1424 = vmatprep.subr.bf16.mxu0 0
        %1425 = vmatpush1.bf16.msra.mxu0 %v1290
        %1426 = vmatprep.subr.bf16.mxu0 0
        %1427 = vmatpush1.bf16.msra.mxu0 %v1291
        %1428 = vmatprep.subr.bf16.mxu0 0
        %1429 = vmatpush1.bf16.msra.mxu0 %v1292
        %1430 = vmatprep.subr.bf16.mxu0 0
        %1431 = vmatpush1.bf16.msra.mxu0 %v1293
        %1432 = vmatprep.subr.bf16.mxu0 0
        %1433 = vmatpush1.bf16.msra.mxu0 %v1294
        %1434 = vmatprep.subr.bf16.mxu0 0
        %1435 = vmatpush1.bf16.msra.mxu0 %v1295
        %1436 = vmatprep.subr.bf16.mxu0 0
        %1437 = vmatpush1.bf16.msra.mxu0 %v1296
        %1438 = vmatprep.subr.bf16.mxu0 0
        %1439 = vmatpush1.bf16.msra.mxu0 %v1297
        %1440 = vmatprep.subr.bf16.mxu0 0
        %1441 = vmatpush1.bf16.msra.mxu0 %v1298
        %1442 = vmatprep.subr.bf16.mxu0 0
        %1443 = vmatpush1.bf16.msra.mxu0 %v1299
        %1444 = vmatprep.mubr.bf16.mxu0 %v862
        %1445 = vmatmul.mubr.bf16.gmra.mrb[0].mxu0 %v861
        %v1446 = vpop.f32.mrb[0].mxu0
        %v1447 = vadd.f32 %v1026, %v1446
        %v1448 = vpop.f32.mrb[0].mxu0
        %v1449 = vpop.f32.mrb[0].mxu0
        %v1450 = vadd.f32 %v1026, %v1449
        %v1451 = vpop.f32.mrb[0].mxu0
        %1452 = vmatprep.mubr.bf16.mxu0 %v870
        %1453 = vmatmul.mubr.bf16.gmra.mrb[0].mxu0 %v869
        %v1454 = vpop.f32.mrb[0].mxu0
        %v1455 = vadd.f32 %v1026, %v1454
        %v1456 = vpop.f32.mrb[0].mxu0
        %v1457 = vpop.f32.mrb[0].mxu0
        %v1458 = vadd.f32 %v1026, %v1457
        %v1459 = vpop.f32.mrb[0].mxu0
        %1460 = vmatprep.mubr.bf16.mxu0 %v878
        %1461 = vmatmul.mubr.bf16.gmra.mrb[0].mxu0 %v877
        %v1462 = vpop.f32.mrb[0].mxu0
        %v1463 = vadd.f32 %v1026, %v1462
        %v1464 = vpop.f32.mrb[0].mxu0
        %v1465 = vpop.f32.mrb[0].mxu0
        %v1466 = vadd.f32 %v1026, %v1465
        %v1467 = vpop.f32.mrb[0].mxu0
        %1468 = vmatprep.mubr.bf16.mxu0 %v886
        %1469 = vmatmul.mubr.bf16.gmra.mrb[0].mxu0 %v885
        %v1470 = vpop.f32.mrb[0].mxu0
        %v1471 = vadd.f32 %v1026, %v1470
        %v1472 = vpop.f32.mrb[0].mxu0
        %v1473 = vpop.f32.mrb[0].mxu0
        %v1474 = vadd.f32 %v1026, %v1473
        %v1475 = vpop.f32.mrb[0].mxu0
        %1476 = vdwg.mxu0
        %1477 = vmatprep.subr.bf16.mxu0 0
        %1478 = vmatpush1.bf16.msra.mxu0 %v1300
        %1479 = vmatprep.subr.bf16.mxu0 0
        %1480 = vmatpush1.bf16.msra.mxu0 %v1301
        %1481 = vmatprep.subr.bf16.mxu0 0
        %1482 = vmatpush1.bf16.msra.mxu0 %v1302
        %1483 = vmatprep.subr.bf16.mxu0 0
        %1484 = vmatpush1.bf16.msra.mxu0 %v1303
        %1485 = vmatprep.subr.bf16.mxu0 0
        %1486 = vmatpush1.bf16.msra.mxu0 %v1304
        %1487 = vmatprep.subr.bf16.mxu0 0
        %1488 = vmatpush1.bf16.msra.mxu0 %v1305
        %1489 = vmatprep.subr.bf16.mxu0 0
        %1490 = vmatpush1.bf16.msra.mxu0 %v1306
        %1491 = vmatprep.subr.bf16.mxu0 0
        %1492 = vmatpush1.bf16.msra.mxu0 %v1307
        %1493 = vmatprep.subr.bf16.mxu0 0
        %1494 = vmatpush1.bf16.msra.mxu0 %v1308
        %1495 = vmatprep.subr.bf16.mxu0 0
        %1496 = vmatpush1.bf16.msra.mxu0 %v1309
        %1497 = vmatprep.subr.bf16.mxu0 0
        %1498 = vmatpush1.bf16.msra.mxu0 %v1310
        %1499 = vmatprep.subr.bf16.mxu0 0
        %1500 = vmatpush1.bf16.msra.mxu0 %v1311
        %1501 = vmatprep.subr.bf16.mxu0 0
        %1502 = vmatpush1.bf16.msra.mxu0 %v1312
        %1503 = vmatprep.subr.bf16.mxu0 0
        %1504 = vmatpush1.bf16.msra.mxu0 %v1313
        %1505 = vmatprep.subr.bf16.mxu0 0
        %1506 = vmatpush1.bf16.msra.mxu0 %v1314
        %1507 = vmatprep.subr.bf16.mxu0 0
        %1508 = vmatpush1.bf16.msra.mxu0 %v1315
        %1509 = vmatprep.mubr.bf16.mxu0 %v864
        %1510 = vmatmul.mubr.bf16.gmra.mrb[0].mxu0 %v863
        %v1511 = vpop.f32.mrb[0].mxu0
        %v1512 = vadd.f32 %v1447, %v1511
        %v1513 = vpop.f32.mrb[0].mxu0
        %v1514 = vpop.f32.mrb[0].mxu0
        %v1515 = vadd.f32 %v1450, %v1514
        %v1516 = vpop.f32.mrb[0].mxu0
        %1517 = vmatprep.mubr.bf16.mxu0 %v872
        %1518 = vmatmul.mubr.bf16.gmra.mrb[0].mxu0 %v871
        %v1519 = vpop.f32.mrb[0].mxu0
        %v1520 = vadd.f32 %v1455, %v1519
        %v1521 = vpop.f32.mrb[0].mxu0
        %v1522 = vpop.f32.mrb[0].mxu0
        %v1523 = vadd.f32 %v1458, %v1522
        %v1524 = vpop.f32.mrb[0].mxu0
        %1525 = vmatprep.mubr.bf16.mxu0 %v880
        %1526 = vmatmul.mubr.bf16.gmra.mrb[0].mxu0 %v879
        %v1527 = vpop.f32.mrb[0].mxu0
        %v1528 = vadd.f32 %v1463, %v1527
        %v1529 = vpop.f32.mrb[0].mxu0
        %v1530 = vpop.f32.mrb[0].mxu0
        %v1531 = vadd.f32 %v1466, %v1530
        %v1532 = vpop.f32.mrb[0].mxu0
        %1533 = vmatprep.mubr.bf16.mxu0 %v888
        %1534 = vmatmul.mubr.bf16.gmra.mrb[0].mxu0 %v887
        %v1535 = vpop.f32.mrb[0].mxu0
        %v1536 = vadd.f32 %v1471, %v1535
        %v1537 = vpop.f32.mrb[0].mxu0
        %v1538 = vpop.f32.mrb[0].mxu0
        %v1539 = vadd.f32 %v1474, %v1538
        %v1540 = vpop.f32.mrb[0].mxu0
        %1541 = vdwg.mxu0
        %1542 = vmatprep.subr.bf16.mxu0 0
        %1543 = vmatpush1.bf16.msra.mxu0 %v1316
        %1544 = vmatprep.subr.bf16.mxu0 0
        %1545 = vmatpush1.bf16.msra.mxu0 %v1317
        %1546 = vmatprep.subr.bf16.mxu0 0
        %1547 = vmatpush1.bf16.msra.mxu0 %v1318
        %1548 = vmatprep.subr.bf16.mxu0 0
        %1549 = vmatpush1.bf16.msra.mxu0 %v1319
        %1550 = vmatprep.subr.bf16.mxu0 0
        %1551 = vmatpush1.bf16.msra.mxu0 %v1320
        %1552 = vmatprep.subr.bf16.mxu0 0
        %1553 = vmatpush1.bf16.msra.mxu0 %v1321
        %1554 = vmatprep.subr.bf16.mxu0 0
        %1555 = vmatpush1.bf16.msra.mxu0 %v1322
        %1556 = vmatprep.subr.bf16.mxu0 0
        %1557 = vmatpush1.bf16.msra.mxu0 %v1323
        %1558 = vmatprep.subr.bf16.mxu0 0
        %1559 = vmatpush1.bf16.msra.mxu0 %v1324
        %1560 = vmatprep.subr.bf16.mxu0 0
        %1561 = vmatpush1.bf16.msra.mxu0 %v1325
        %1562 = vmatprep.subr.bf16.mxu0 0
        %1563 = vmatpush1.bf16.msra.mxu0 %v1326
        %1564 = vmatprep.subr.bf16.mxu0 0
        %1565 = vmatpush1.bf16.msra.mxu0 %v1327
        %1566 = vmatprep.subr.bf16.mxu0 0
        %1567 = vmatpush1.bf16.msra.mxu0 %v1328
        %1568 = vmatprep.subr.bf16.mxu0 0
        %1569 = vmatpush1.bf16.msra.mxu0 %v1329
        %1570 = vmatprep.subr.bf16.mxu0 0
        %1571 = vmatpush1.bf16.msra.mxu0 %v1330
        %1572 = vmatprep.subr.bf16.mxu0 0
        %1573 = vmatpush1.bf16.msra.mxu0 %v1331
        %1574 = vmatprep.mubr.bf16.mxu0 %v866
        %1575 = vmatmul.mubr.bf16.gmra.mrb[0].mxu0 %v865
        %v1576 = vpop.f32.mrb[0].mxu0
        %v1577 = vadd.f32 %v1512, %v1576
        %v1578 = vpop.f32.mrb[0].mxu0
        %v1579 = vpop.f32.mrb[0].mxu0
        %v1580 = vadd.f32 %v1515, %v1579
        %v1581 = vpop.f32.mrb[0].mxu0
        %1582 = vmatprep.mubr.bf16.mxu0 %v874
        %1583 = vmatmul.mubr.bf16.gmra.mrb[0].mxu0 %v873
        %v1584 = vpop.f32.mrb[0].mxu0
        %v1585 = vadd.f32 %v1520, %v1584
        %v1586 = vpop.f32.mrb[0].mxu0
        %v1587 = vpop.f32.mrb[0].mxu0
        %v1588 = vadd.f32 %v1523, %v1587
        %v1589 = vpop.f32.mrb[0].mxu0
        %1590 = vmatprep.mubr.bf16.mxu0 %v882
        %1591 = vmatmul.mubr.bf16.gmra.mrb[0].mxu0 %v881
        %v1592 = vpop.f32.mrb[0].mxu0
        %v1593 = vadd.f32 %v1528, %v1592
        %v1594 = vpop.f32.mrb[0].mxu0
        %v1595 = vpop.f32.mrb[0].mxu0
        %v1596 = vadd.f32 %v1531, %v1595
        %v1597 = vpop.f32.mrb[0].mxu0
        %1598 = vmatprep.mubr.bf16.mxu0 %v890
        %1599 = vmatmul.mubr.bf16.gmra.mrb[0].mxu0 %v889
        %v1600 = vpop.f32.mrb[0].mxu0
        %v1601 = vadd.f32 %v1536, %v1600
        %v1602 = vpop.f32.mrb[0].mxu0
        %v1603 = vpop.f32.mrb[0].mxu0
        %v1604 = vadd.f32 %v1539, %v1603
        %v1605 = vpop.f32.mrb[0].mxu0
        %1606 = vdwg.mxu0
        %1607 = vmatprep.subr.bf16.mxu0 0
        %1608 = vmatpush1.bf16.msra.mxu0 %v1332
        %1609 = vmatprep.subr.bf16.mxu0 0
        %1610 = vmatpush1.bf16.msra.mxu0 %v1333
        %1611 = vmatprep.subr.bf16.mxu0 0
        %1612 = vmatpush1.bf16.msra.mxu0 %v1334
        %1613 = vmatprep.subr.bf16.mxu0 0
        %1614 = vmatpush1.bf16.msra.mxu0 %v1335
        %1615 = vmatprep.subr.bf16.mxu0 0
        %1616 = vmatpush1.bf16.msra.mxu0 %v1336
        %1617 = vmatprep.subr.bf16.mxu0 0
        %1618 = vmatpush1.bf16.msra.mxu0 %v1337
        %1619 = vmatprep.subr.bf16.mxu0 0
        %1620 = vmatpush1.bf16.msra.mxu0 %v1338
        %1621 = vmatprep.subr.bf16.mxu0 0
        %1622 = vmatpush1.bf16.msra.mxu0 %v1339
        %1623 = vmatprep.subr.bf16.mxu0 0
        %1624 = vmatpush1.bf16.msra.mxu0 %v1340
        %1625 = vmatprep.subr.bf16.mxu0 0
        %1626 = vmatpush1.bf16.msra.mxu0 %v1341
        %1627 = vmatprep.subr.bf16.mxu0 0
        %1628 = vmatpush1.bf16.msra.mxu0 %v1342
        %1629 = vmatprep.subr.bf16.mxu0 0
        %1630 = vmatpush1.bf16.msra.mxu0 %v1343
        %1631 = vmatprep.subr.bf16.mxu0 0
        %1632 = vmatpush1.bf16.msra.mxu0 %v1344
        %1633 = vmatprep.subr.bf16.mxu0 0
        %1634 = vmatpush1.bf16.msra.mxu0 %v1345
        %1635 = vmatprep.subr.bf16.mxu0 0
        %1636 = vmatpush1.bf16.msra.mxu0 %v1346
        %1637 = vmatprep.subr.bf16.mxu0 0
        %1638 = vmatpush1.bf16.msra.mxu0 %v1347
        %1639 = vmatprep.mubr.bf16.mxu0 %v868
        %1640 = vmatmul.mubr.bf16.gmra.mrb[0].mxu0 %v867
        %v1641 = vpop.f32.mrb[0].mxu0
        %v1642 = vadd.f32 %v1577, %v1641
        %v1643 = vpop.f32.mrb[0].mxu0
        %v1644 = vpop.f32.mrb[0].mxu0
        %v1645 = vadd.f32 %v1580, %v1644
        %v1646 = vpop.f32.mrb[0].mxu0
        %1647 = vmatprep.mubr.bf16.mxu0 %v876
        %1648 = vmatmul.mubr.bf16.gmra.mrb[0].mxu0 %v875
        %v1649 = vpop.f32.mrb[0].mxu0
        %v1650 = vadd.f32 %v1585, %v1649
        %v1651 = vpop.f32.mrb[0].mxu0
        %v1652 = vpop.f32.mrb[0].mxu0
        %v1653 = vadd.f32 %v1588, %v1652
        %v1654 = vpop.f32.mrb[0].mxu0
        %1655 = vmatprep.mubr.bf16.mxu0 %v884
        %1656 = vmatmul.mubr.bf16.gmra.mrb[0].mxu0 %v883
        %v1657 = vpop.f32.mrb[0].mxu0
        %v1658 = vadd.f32 %v1593, %v1657
        %v1659 = vpop.f32.mrb[0].mxu0
        %v1660 = vpop.f32.mrb[0].mxu0
        %v1661 = vadd.f32 %v1596, %v1660
        %v1662 = vpop.f32.mrb[0].mxu0
        %1663 = vmatprep.mubr.bf16.mxu0 %v892
        %1664 = vmatmul.mubr.bf16.gmra.mrb[0].mxu0 %v891
        %v1665 = vpop.f32.mrb[0].mxu0
        %v1666 = vadd.f32 %v1601, %v1665
        %v1667 = vpop.f32.mrb[0].mxu0
        %v1668 = vpop.f32.mrb[0].mxu0
        %v1669 = vadd.f32 %v1604, %v1668
        %v1670 = vpop.f32.mrb[0].mxu0
        %1671 = vdwg.mxu0
        %v1672 = vmax.f32 %v1642, 0.0
        %v1673 = vmax.f32 %v1645, 0.0
        %v1674 = vmax.f32 %v1650, 0.0
        %v1675 = vmax.f32 %v1653, 0.0
        %v1676 = vmax.f32 %v1658, 0.0
        %v1677 = vmax.f32 %v1661, 0.0
        %v1678 = vmax.f32 %v1666, 0.0
        %v1679 = vmax.f32 %v1669, 0.0
        %v1680 = vpack.c.bf16 %v1673, %v1672
        %v1681 = vpack.c.bf16 %v1675, %v1674
        %v1682 = vpack.c.bf16 %v1677, %v1676
        %v1683 = vpack.c.bf16 %v1679, %v1678
        %v1684 = vld [vmem:[%s4] sm:$0xf]
        %v1685 = vld [vmem:[%s4 + $0x4] sm:$0xf]
        %v1686 = vld [vmem:[%s4 + $0x8] sm:$0xf]
        %v1687 = vld [vmem:[%s4 + $0xc] sm:$0xf]
        %v1688 = vld [vmem:[%s4 + $0x10] sm:$0xf]
        %v1689 = vld [vmem:[%s4 + $0x14] sm:$0xf]
        %v1690 = vld [vmem:[%s4 + $0x18] sm:$0xf]
        %v1691 = vld [vmem:[%s4 + $0x1c] sm:$0xf]
        %v1692 = vld [vmem:[%s4 + $0x20] sm:$0xf]
        %v1693 = vld [vmem:[%s4 + $0x24] sm:$0xf]
        %v1694 = vld [vmem:[%s4 + $0x28] sm:$0xf]
        %v1695 = vld [vmem:[%s4 + $0x2c] sm:$0xf]
        %v1696 = vld [vmem:[%s4 + $0x30] sm:$0xf]
        %v1697 = vld [vmem:[%s4 + $0x34] sm:$0xf]
        %v1698 = vld [vmem:[%s4 + $0x38] sm:$0xf]
        %v1699 = vld [vmem:[%s4 + $0x3c] sm:$0xf]
        %s1700 = sld [smem:[#allocation2]]
        %v1701 = vstv %s1700
        %v1718 = vunpack.c.l.b16 %v1684
        %v1719 = vunpack.c.l.b16 %v1685
        %v1720 = vunpack.c.l.b16 %v1686
        %v1721 = vunpack.c.l.b16 %v1687
        %v1722 = vunpack.c.l.b16 %v1688
        %v1723 = vunpack.c.l.b16 %v1689
        %v1724 = vunpack.c.l.b16 %v1690
        %v1725 = vunpack.c.l.b16 %v1691
        %v1726 = vunpack.c.l.b16 %v1692
        %v1727 = vunpack.c.l.b16 %v1693
        %v1728 = vunpack.c.l.b16 %v1694
        %v1729 = vunpack.c.l.b16 %v1695
        %v1730 = vunpack.c.l.b16 %v1696
        %v1731 = vunpack.c.l.b16 %v1697
        %v1732 = vunpack.c.l.b16 %v1698
        %v1733 = vunpack.c.l.b16 %v1699
        %v1734 = vpack.c.b16 %v1719, %v1718
        %v1735 = vpack.c.b16 %v1721, %v1720
        %v1736 = vpack.c.b16 %v1723, %v1722
        %v1737 = vpack.c.b16 %v1725, %v1724
        %v1738 = vpack.c.b16 %v1727, %v1726
        %v1739 = vpack.c.b16 %v1729, %v1728
        %v1740 = vpack.c.b16 %v1731, %v1730
        %v1741 = vpack.c.b16 %v1733, %v1732
        %1750 = vmatprep.subr.bf16.mxu0 0
        %1751 = vmatpush1.bf16.msra.mxu0 %v1734
        %1752 = vmatprep.subr.bf16.mxu0 0
        %1753 = vmatpush1.bf16.msra.mxu0 %v1735
        %1754 = vmatprep.subr.bf16.mxu0 0
        %1755 = vmatpush1.bf16.msra.mxu0 %v1736
        %1756 = vmatprep.subr.bf16.mxu0 0
        %1757 = vmatpush1.bf16.msra.mxu0 %v1737
        %1758 = vmatprep.subr.bf16.mxu0 0
        %1759 = vmatpush1.bf16.msra.mxu0 %v1738
        %1760 = vmatprep.subr.bf16.mxu0 0
        %1761 = vmatpush1.bf16.msra.mxu0 %v1739
        %1762 = vmatprep.subr.bf16.mxu0 0
        %1763 = vmatpush1.bf16.msra.mxu0 %v1740
        %1764 = vmatprep.subr.bf16.mxu0 0
        %1765 = vmatpush1.bf16.msra.mxu0 %v1741
        %1766 = vmatprep.subr.bf16.mxu0 0
        %1767 = vmatpush1.bf16.msra.mxu0 0
        %1768 = vmatprep.subr.bf16.mxu0 0
        %1769 = vmatpush1.bf16.msra.mxu0 0
        %1770 = vmatprep.subr.bf16.mxu0 0
        %1771 = vmatpush1.bf16.msra.mxu0 0
        %1772 = vmatprep.subr.bf16.mxu0 0
        %1773 = vmatpush1.bf16.msra.mxu0 0
        %1774 = vmatprep.subr.bf16.mxu0 0
        %1775 = vmatpush1.bf16.msra.mxu0 0
        %1776 = vmatprep.subr.bf16.mxu0 0
        %1777 = vmatpush1.bf16.msra.mxu0 0
        %1778 = vmatprep.subr.bf16.mxu0 0
        %1779 = vmatpush1.bf16.msra.mxu0 0
        %1780 = vmatprep.subr.bf16.mxu0 0
        %1781 = vmatpush1.bf16.msra.mxu0 0
        %1782 = vmatprep.mubr.bf16.mxu0 0
        %1783 = vmatmul.mubr.bf16.gmra.mrb[0].mxu0 %v1680
        %v1784 = vpop.f32.mrb[0].mxu0
        %v1785 = vadd.f32 %v1701, %v1784
        %v1786 = vpop.f32.mrb[0].mxu0
        %v1787 = vpop.f32.mrb[0].mxu0
        %v1788 = vadd.f32 %v1701, %v1787
        %v1789 = vpop.f32.mrb[0].mxu0
        %1790 = vmatprep.mubr.bf16.mxu0 0
        %1791 = vmatmul.mubr.bf16.gmra.mrb[0].mxu0 %v1681
        %v1792 = vpop.f32.mrb[0].mxu0
        %v1793 = vadd.f32 %v1701, %v1792
        %v1794 = vpop.f32.mrb[0].mxu0
        %v1795 = vpop.f32.mrb[0].mxu0
        %v1796 = vadd.f32 %v1701, %v1795
        %v1797 = vpop.f32.mrb[0].mxu0
        %1798 = vmatprep.mubr.bf16.mxu0 0
        %1799 = vmatmul.mubr.bf16.gmra.mrb[0].mxu0 %v1682
        %v1800 = vpop.f32.mrb[0].mxu0
        %v1801 = vadd.f32 %v1701, %v1800
        %v1802 = vpop.f32.mrb[0].mxu0
        %v1803 = vpop.f32.mrb[0].mxu0
        %v1804 = vadd.f32 %v1701, %v1803
        %v1805 = vpop.f32.mrb[0].mxu0
        %1806 = vmatprep.mubr.bf16.mxu0 0
        %1807 = vmatmul.mubr.bf16.gmra.mrb[0].mxu0 %v1683
        %v1808 = vpop.f32.mrb[0].mxu0
        %v1809 = vadd.f32 %v1701, %v1808
        %v1810 = vpop.f32.mrb[0].mxu0
        %v1811 = vpop.f32.mrb[0].mxu0
        %v1812 = vadd.f32 %v1701, %v1811
        %v1813 = vpop.f32.mrb[0].mxu0
        %1814 = vdwg.mxu0
        %vm1815 = vcmask 7168
        %1816 = vst.msk [vmem:[%s269] sm:$0xff] %vm1815, %v1785
        %1817 = vst.msk [vmem:[%s269 + $0x8] sm:$0xff] %vm1815, %v1788
        %1818 = vst.msk [vmem:[%s269 + $0x10] sm:$0xff] %vm1815, %v1793
        %1819 = vst.msk [vmem:[%s269 + $0x18] sm:$0xff] %vm1815, %v1796
        %1820 = vst.msk [vmem:[%s269 + $0x20] sm:$0xff] %vm1815, %v1801
        %1821 = vst.msk [vmem:[%s269 + $0x28] sm:$0xff] %vm1815, %v1804
        %1822 = vst.msk [vmem:[%s269 + $0x30] sm:$0xff] %vm1815, %v1809
        %1823 = vst.msk [vmem:[%s269 + $0x38] sm:$0xff] %vm1815, %v1812
        %s1824 = smul.u32 8, %s19
        %p1825 = scmp.lt.s32.totalorder %s1824, 15
        %s1826 = scalar_select %p1825, %s1824, 15
        %s1827 = smul.addr %s1826, 8
        %s1828 = scalar_lea.vmem %s6, %s1827
        // Predicated region
        $region49: #{discriminator_wgan_forward.1} parent=43 // pred_check
          %p1829 = pneg %p168
        $region50: #{discriminator_wgan_forward.1} parent=43 // pred_check_branch
          %1831 = sbr.rel (%p1829) target = $region52
        $region51: #{discriminator_wgan_forward.1} parent=43 // pred_region
          %s1832 = smul.u32 8, %s19
        $region52: #{discriminator_wgan_forward.1} parent=43 // pred_fallthru
          _
      $region44: #{discriminator_wgan_forward.1} parent=5 // pred_fallthru
        _
      %p1833 = scmp.le.s32.totalorder 2, %s14
      // Predicated region
      $region53: #{discriminator_wgan_forward.1} parent=5 // pred_check
        %p1834 = pneg %p1833
      $region54: #{discriminator_wgan_forward.1} parent=5 // pred_check_branch
        %1836 = sbr.rel (%p1834) target = $region56
      $region55: #{discriminator_wgan_forward.1} parent=5 // pred_region
        %s1837 = ssub.s32 %s14, 2
        // Predicated region
        $region57: #{discriminator_wgan_forward.1} parent=55 // pred_check
          %p1838 = pneg %p174
        $region58: #{discriminator_wgan_forward.1} parent=55 // pred_check_branch
          %1840 = sbr.rel (%p1838) target = $region60
        $region59: #{discriminator_wgan_forward.1} parent=55 // pred_region
          %s1841 = smul.u32 8, %s20
          %p1842 = scmp.lt.s32.totalorder %s1841, 15
          %s1843 = scalar_select %p1842, %s1841, 15
          %s1844 = smul.addr %s1843, 8
          %s1845 = scalar_lea.vmem %s6, %s1844
        $region60: #{discriminator_wgan_forward.1} parent=55 // pred_fallthru
          _
      $region56: #{discriminator_wgan_forward.1} parent=5 // pred_fallthru
        _
    $region6: #{discriminator_wgan_forward.1} parent=1 // loop_footer
      %s18 = sadd.s32 1, %s14
    $region7: #{discriminator_wgan_forward.1} parent=1 // loop_footer_branch
      %13 = sbr.rel target = $region3
    $region8: #{discriminator_wgan_forward.1} parent=1 // loop_exit
      _
    %1846 = vsyncpa [#allocation4], 1
    %s1847 = scalar_lea.sflag [#allocation4], 1
    %1848 = vsyncpa %s1847, 1

</llo_original>
